<compile_context>
chip_gen: v7x
topology: tpu7x:2x2x1
jax: 0.10.0
libtpu: 0.0.40
codegen_flags: <defaults>
</compile_context>

<pallas_src>
import functools

import jax
import jax.numpy as jnp
from jax.experimental import pallas as pl
from jax.experimental.pallas import tpu as pltpu


def _char_embed_kernel(ids_ref, hi_ref, lo_ref, mdw_ref, pw_ref, bias_ref,
                       out_ref, *, kernel_size):
    ids = ids_ref[...]                                    # (N, W) int32
    N, W = ids.shape
    Vp, D = hi_ref.shape
    NW = N * W

    # --- Embedding lookup: bf16 one-hot, tiny broadcast iota -------------------
    vocab_iota = jax.lax.broadcasted_iota(jnp.int32, (1, 1, Vp), 2)
    onehot = (ids[:, :, None] == vocab_iota).astype(jnp.bfloat16)    # (N, W, Vp)
    onehot = onehot.reshape(NW, Vp)
    # hi/lo split: two single-pass bf16 MXU matmuls, ~f32-accurate lookup.
    emb = (jnp.dot(onehot, hi_ref[...], preferred_element_type=jnp.float32)
           + jnp.dot(onehot, lo_ref[...], preferred_element_type=jnp.float32))
    emb = emb.reshape(N, W, D)                            # (N, W, D) f32

    # --- Depthwise conv along W ------------------------------------------------
    # y[w, d] = sum_k emb[w + k - P, d] * dw[k, d] with zero 'same' padding.
    # Boundary zeros are pre-folded into mdw[k] (W, D): each tap is only an
    # XLU roll plus one VPU multiply-add.
    K = kernel_size
    P = (K - 1) // 2
    y = emb * mdw_ref[P][None]                            # centre tap: no roll
    for k in range(K):                                    # static unroll (K = 5)
        if k == P:
            continue
        shift = k - P
        rolled = pltpu.roll(emb, (-shift) % W, axis=1)    # rolled[w] = emb[(w+shift) % W]
        y = y + rolled * mdw_ref[k][None]
    # TODO(synk): on v6e/v7x, A/B folding the K taps into one depth-K*D
    # pointwise matmul (fills the 256-deep MXU); the roll+VPU form is kept since
    # it is the right choice on v5e's 128-deep MXU.

    # --- Pointwise 1x1 conv (single f32 MXU matmul over channels) --------------
    z = jnp.dot(y.reshape(NW, D), pw_ref[...],
                precision=jax.lax.Precision.HIGHEST,
                preferred_element_type=jnp.float32)       # (NW, O)

    # --- Max over W first, then bias + ReLU (exact: both commute with max) -----
    O = z.shape[-1]
    zmax = jnp.max(z.reshape(N, W, O), axis=1)            # (N, O)
    out_ref[...] = jnp.maximum(zmax + bias_ref[...], 0.0).astype(out_ref.dtype)


def _round_up(x, m):
    return (x + m - 1) // m * m


def _vmem_limit_bytes(tile_rows, W, Vp, D, O, K):
    """Derive a scoped-VMEM limit from the actual per-step footprint."""
    NW = tile_rows * W
    io = 2 * tile_rows * (W + O) * 4                          # double-buffered ids + out
    inv = 2 * (2 * Vp * D * 2 + K * W * D * 4 + D * O * 4 + O * 4)  # grid-invariant operands
    temps = NW * (Vp * 2 + 4 * D * 4 + O * 4)                 # onehot(bf16) + ~4 f32 temps + z
    est = io + inv + temps
    # 2x slack for Mosaic internal scratch; override v5e's 16 MiB scoped default
    # but stay well inside v7x's 64 MiB physical VMEM.
    return int(min(max(2 * est, 24 << 20), 56 << 20))


def character_depthwise_embedding(ids, table, dw_w, pw_w, pw_b,
                                  *, kernel_size=5, tile_rows=512):
    """ids: (B,S,W) int; table: (V,D); dw_w: (K,D); pw_w: (D,O); pw_b: (O,).

    Returns (B, S, O) float32.  tile_rows is the number of (B*S) rows handled
    per grid step (clamped / padded automatically).
    """
    B, S, W = ids.shape
    V, D = table.shape
    O = pw_w.shape[1]
    K = kernel_size
    P = (K - 1) // 2
    BS = B * S

    # Row tiling: big tiles, padded grid — no divisibility requirement on B*S.
    tile_rows = max(8, min(tile_rows, _round_up(BS, 8)))
    tile_rows = _round_up(tile_rows, 8)
    if BS >= 16:
        # Keep >= 2 grid steps so both v7x TensorCores get work.
        tile_rows = min(tile_rows, _round_up(pl.cdiv(BS, 2), 8))
    BS_pad = _round_up(BS, tile_rows)

    ids_flat = ids.reshape(BS, W).astype(jnp.int32)
    if BS_pad != BS:
        ids_flat = jnp.pad(ids_flat, ((0, BS_pad - BS), (0, 0)))    # id 0 is valid; rows dropped later

    # Zero-pad the vocab to 128 rows -> clean 128-deep unmasked MXU contraction;
    # bf16 hi/lo split of the table keeps the lookup ~f32 accurate.
    Vp = _round_up(max(V, 128), 128)
    table_f32 = jnp.pad(table.astype(jnp.float32), ((0, Vp - V), (0, 0)))
    table_hi = table_f32.astype(jnp.bfloat16)
    table_lo = (table_f32 - table_hi.astype(jnp.float32)).astype(jnp.bfloat16)

    # Pre-masked depthwise weights: mdw[k, w, d] = dw[k, d] if 0 <= w+k-P < W else 0.
    w_pos = jnp.arange(W)[None, :]                        # (1, W)
    taps = (jnp.arange(K) - P)[:, None]                   # (K, 1)
    valid = ((w_pos + taps) >= 0) & ((w_pos + taps) < W)  # (K, W)
    mdw = jnp.where(valid[:, :, None], dw_w.astype(jnp.float32)[:, None, :], 0.0)

    pw = pw_w.astype(jnp.float32)
    bias2d = pw_b.reshape(1, O).astype(jnp.float32)

    out = pl.pallas_call(
        functools.partial(_char_embed_kernel, kernel_size=kernel_size),
        out_shape=jax.ShapeDtypeStruct((BS_pad, O), jnp.float32),
        grid_spec=pltpu.PrefetchScalarGridSpec(
            num_scalar_prefetch=0,
            grid=(BS_pad // tile_rows,),
            in_specs=[
                pl.BlockSpec((tile_rows, W), lambda i: (i, 0)),       # ids tile
                pl.BlockSpec((Vp, D), lambda i: (0, 0)),              # table hi (bf16)
                pl.BlockSpec((Vp, D), lambda i: (0, 0)),              # table lo (bf16)
                pl.BlockSpec((K, W, D), lambda i: (0, 0, 0)),         # masked depthwise w
                pl.BlockSpec((D, O), lambda i: (0, 0)),               # pointwise w
                pl.BlockSpec((1, O), lambda i: (0, 0)),               # pointwise bias
            ],
            out_specs=pl.BlockSpec((tile_rows, O), lambda i: (i, 0)),
        ),
        compiler_params=pltpu.CompilerParams(
            dimension_semantics=("parallel",),
            vmem_limit_bytes=_vmem_limit_bytes(tile_rows, W, Vp, D, O, K),
        ),
    )(ids_flat, table_hi, table_lo, mdw, pw, bias2d)

    # F.dropout(p=0.1, training=False) is the identity at inference.
    return out[:BS].reshape(B, S, O)


def _reference(ids, table, dw_w, pw_w, pw_b, kernel_size=5):
    """Pure-JAX reference mirroring the PyTorch forward (eval mode)."""
    K, P = kernel_size, (kernel_size - 1) // 2
    emb = table[ids]                                           # (B,S,W,D)
    W = emb.shape[2]
    padded = jnp.pad(emb, ((0, 0), (0, 0), (P, P), (0, 0)))
    y = sum(padded[:, :, k:k + W, :] * dw_w[k][None, None, None, :]
            for k in range(K))                                 # depthwise
    z = jnp.einsum("bswd,do->bswo", y, pw_w,
                   precision=jax.lax.Precision.HIGHEST) + pw_b  # pointwise + bias
    z = jnp.maximum(z, 0.0)
    return jnp.max(z, axis=2)                                  # max over W


if __name__ == "__main__":
    # Small shapes consistent with the module: num_embed=70, embed_dim=64,
    # out_ch=64, kernel_size=5, word_len=16.
    V, D, O, K = 70, 64, 64, 5
    key = jax.random.PRNGKey(0)
    k_ids, k_tab, k_dw, k_pw, k_b, k_ids2 = jax.random.split(key, 6)

    table = jax.random.normal(k_tab, (V, D), jnp.float32) * 0.1
    dw_w = jax.random.normal(k_dw, (K, D), jnp.float32) * 0.1   # torch w[d,0,0,k] -> dw_w[k,d]
    pw_w = jax.random.normal(k_pw, (D, O), jnp.float32) * 0.1   # torch w[o,d,0,0] -> pw_w[d,o]
    pw_b = jax.random.normal(k_b, (O,), jnp.float32) * 0.1

    # Case 1: batch=2, seq=8, word_len=16 — exercises the >=2-step grid clamp.
    B, S, W = 2, 8, 16
    ids = jax.random.randint(k_ids, (B, S, W), 0, V, dtype=jnp.int32)
    out = jax.block_until_ready(
        character_depthwise_embedding(ids, table, dw_w, pw_w, pw_b, kernel_size=K))
    ref = _reference(ids, table, dw_w, pw_w, pw_b, kernel_size=K)
    assert out.shape == (B, S, O), out.shape
    assert jnp.allclose(out, ref, rtol=1e-4, atol=1e-4), \
        float(jnp.max(jnp.abs(out - ref)))

    # Case 2: B*S = 21 — exercises the padded grid (no divisibility assert).
    B2, S2 = 3, 7
    ids2 = jax.random.randint(k_ids2, (B2, S2, W), 0, V, dtype=jnp.int32)
    out2 = jax.block_until_ready(
        character_depthwise_embedding(ids2, table, dw_w, pw_w, pw_b,
                                      kernel_size=K, tile_rows=8))
    ref2 = _reference(ids2, table, dw_w, pw_w, pw_b, kernel_size=K)
    assert out2.shape == (B2, S2, O), out2.shape
    assert jnp.allclose(out2, ref2, rtol=1e-4, atol=1e-4), \
        float(jnp.max(jnp.abs(out2 - ref2)))

    print("KERNEL_OK")
</pallas_src>

<mosaic_0001>
module attributes {stable_mosaic.version = 11 : i64} {
  func.func @_char_embed_kernel(%arg0: i32, %arg1: memref<8x16xi32, #tpu.memory_space<vmem>>, %arg2: memref<128x64xbf16, #tpu.memory_space<vmem>>, %arg3: memref<128x64xbf16, #tpu.memory_space<vmem>>, %arg4: memref<5x16x64xf32, #tpu.memory_space<vmem>>, %arg5: memref<64x64xf32, #tpu.memory_space<vmem>>, %arg6: memref<1x64xf32, #tpu.memory_space<vmem>>, %arg7: memref<8x64xf32, #tpu.memory_space<vmem>>) attributes {dimension_semantics = [#tpu.dimension_semantics<parallel>], iteration_bounds = array<i64: 2>, scalar_prefetch = 0 : i64, scratch_operands = 0 : i64, tpu.core_type = #tpu.core_type<tc>, window_params = [{transform_indices = @transform_0, window_bounds = array<i64: 8, 16>}, {pipeline_mode = #tpu.pipeline_mode<synchronous>, transform_indices = @transform_1, window_bounds = array<i64: 128, 64>}, {pipeline_mode = #tpu.pipeline_mode<synchronous>, transform_indices = @transform_2, window_bounds = array<i64: 128, 64>}, {pipeline_mode = #tpu.pipeline_mode<synchronous>, transform_indices = @transform_3, window_bounds = array<i64: 5, 16, 64>}, {pipeline_mode = #tpu.pipeline_mode<synchronous>, transform_indices = @transform_4, window_bounds = array<i64: 64, 64>}, {pipeline_mode = #tpu.pipeline_mode<synchronous>, transform_indices = @transform_5, window_bounds = array<i64: 1, 64>}, {transform_indices = @transform_6, window_bounds = array<i64: 8, 64>}]} {
    %c0 = arith.constant 0 : index
    %c0_0 = arith.constant 0 : index
    %0 = vector.load %arg1[%c0, %c0_0] : memref<8x16xi32, #tpu.memory_space<vmem>>, vector<8x16xi32>
    %1 = tpu.iota {dimensions = array<i32: 2>} : vector<1x1x128xi32>
    %2 = vector.shape_cast %0 : vector<8x16xi32> to vector<8x16x1xi32>
    %3 = vector.broadcast %2 : vector<8x16x1xi32> to vector<8x16x128xi32>
    %4 = vector.broadcast %1 : vector<1x1x128xi32> to vector<8x16x128xi32>
    %5 = arith.cmpi eq, %3, %4 : vector<8x16x128xi32>
    %6 = arith.extui %5 : vector<8x16x128xi1> to vector<8x16x128xi32>
    %7 = arith.sitofp %6 : vector<8x16x128xi32> to vector<8x16x128xf32>
    %8 = arith.truncf %7 : vector<8x16x128xf32> to vector<8x16x128xbf16>
    %9 = vector.shape_cast %8 : vector<8x16x128xbf16> to vector<128x128xbf16>
    %c0_1 = arith.constant 0 : index
    %c0_2 = arith.constant 0 : index
    %10 = vector.load %arg2[%c0_1, %c0_2] : memref<128x64xbf16, #tpu.memory_space<vmem>>, vector<128x64xbf16>
    %cst = arith.constant dense<0.000000e+00> : vector<128x64xf32>
    %11 = tpu.matmul %9, %10, %cst {dimension_numbers = #tpu.dot_dimension_numbers<[1], [0], [0], [1], [0, 0, 1, 1], [], []>} : vector<128x128xbf16>, vector<128x64xbf16>, vector<128x64xf32> -> vector<128x64xf32>
    %c0_3 = arith.constant 0 : index
    %c0_4 = arith.constant 0 : index
    %12 = vector.load %arg3[%c0_3, %c0_4] : memref<128x64xbf16, #tpu.memory_space<vmem>>, vector<128x64xbf16>
    %cst_5 = arith.constant dense<0.000000e+00> : vector<128x64xf32>
    %13 = tpu.matmul %9, %12, %cst_5 {dimension_numbers = #tpu.dot_dimension_numbers<[1], [0], [0], [1], [0, 0, 1, 1], [], []>} : vector<128x128xbf16>, vector<128x64xbf16>, vector<128x64xf32> -> vector<128x64xf32>
    %14 = arith.addf %11, %13 : vector<128x64xf32>
    %15 = vector.shape_cast %14 : vector<128x64xf32> to vector<8x16x64xf32>
    %c2 = arith.constant 2 : index
    %c0_6 = arith.constant 0 : index
    %c0_7 = arith.constant 0 : index
    %16 = vector.load %arg4[%c2, %c0_6, %c0_7] : memref<5x16x64xf32, #tpu.memory_space<vmem>>, vector<1x16x64xf32>
    %17 = vector.shape_cast %16 : vector<1x16x64xf32> to vector<16x64xf32>
    %18 = vector.shape_cast %17 : vector<16x64xf32> to vector<1x16x64xf32>
    %19 = vector.broadcast %18 : vector<1x16x64xf32> to vector<8x16x64xf32>
    %20 = arith.mulf %15, %19 : vector<8x16x64xf32>
    %c2_i32 = arith.constant 2 : i32
    %21 = tpu.dynamic_rotate %15 by %c2_i32 dim 1 : vector<8x16x64xf32>, i32 -> vector<8x16x64xf32>
    %c0_8 = arith.constant 0 : index
    %c0_9 = arith.constant 0 : index
    %c0_10 = arith.constant 0 : index
    %22 = vector.load %arg4[%c0_8, %c0_9, %c0_10] : memref<5x16x64xf32, #tpu.memory_space<vmem>>, vector<1x16x64xf32>
    %23 = vector.shape_cast %22 : vector<1x16x64xf32> to vector<16x64xf32>
    %24 = vector.shape_cast %23 : vector<16x64xf32> to vector<1x16x64xf32>
    %25 = vector.broadcast %24 : vector<1x16x64xf32> to vector<8x16x64xf32>
    %26 = arith.mulf %21, %25 : vector<8x16x64xf32>
    %27 = arith.addf %20, %26 : vector<8x16x64xf32>
    %c1_i32 = arith.constant 1 : i32
    %28 = tpu.dynamic_rotate %15 by %c1_i32 dim 1 : vector<8x16x64xf32>, i32 -> vector<8x16x64xf32>
    %c1 = arith.constant 1 : index
    %c0_11 = arith.constant 0 : index
    %c0_12 = arith.constant 0 : index
    %29 = vector.load %arg4[%c1, %c0_11, %c0_12] : memref<5x16x64xf32, #tpu.memory_space<vmem>>, vector<1x16x64xf32>
    %30 = vector.shape_cast %29 : vector<1x16x64xf32> to vector<16x64xf32>
    %31 = vector.shape_cast %30 : vector<16x64xf32> to vector<1x16x64xf32>
    %32 = vector.broadcast %31 : vector<1x16x64xf32> to vector<8x16x64xf32>
    %33 = arith.mulf %28, %32 : vector<8x16x64xf32>
    %34 = arith.addf %27, %33 : vector<8x16x64xf32>
    %c15_i32 = arith.constant 15 : i32
    %35 = tpu.dynamic_rotate %15 by %c15_i32 dim 1 : vector<8x16x64xf32>, i32 -> vector<8x16x64xf32>
    %c3 = arith.constant 3 : index
    %c0_13 = arith.constant 0 : index
    %c0_14 = arith.constant 0 : index
    %36 = vector.load %arg4[%c3, %c0_13, %c0_14] : memref<5x16x64xf32, #tpu.memory_space<vmem>>, vector<1x16x64xf32>
    %37 = vector.shape_cast %36 : vector<1x16x64xf32> to vector<16x64xf32>
    %38 = vector.shape_cast %37 : vector<16x64xf32> to vector<1x16x64xf32>
    %39 = vector.broadcast %38 : vector<1x16x64xf32> to vector<8x16x64xf32>
    %40 = arith.mulf %35, %39 : vector<8x16x64xf32>
    %41 = arith.addf %34, %40 : vector<8x16x64xf32>
    %c14_i32 = arith.constant 14 : i32
    %42 = tpu.dynamic_rotate %15 by %c14_i32 dim 1 : vector<8x16x64xf32>, i32 -> vector<8x16x64xf32>
    %c4 = arith.constant 4 : index
    %c0_15 = arith.constant 0 : index
    %c0_16 = arith.constant 0 : index
    %43 = vector.load %arg4[%c4, %c0_15, %c0_16] : memref<5x16x64xf32, #tpu.memory_space<vmem>>, vector<1x16x64xf32>
    %44 = vector.shape_cast %43 : vector<1x16x64xf32> to vector<16x64xf32>
    %45 = vector.shape_cast %44 : vector<16x64xf32> to vector<1x16x64xf32>
    %46 = vector.broadcast %45 : vector<1x16x64xf32> to vector<8x16x64xf32>
    %47 = arith.mulf %42, %46 : vector<8x16x64xf32>
    %48 = arith.addf %41, %47 : vector<8x16x64xf32>
    %49 = vector.shape_cast %48 : vector<8x16x64xf32> to vector<128x64xf32>
    %c0_17 = arith.constant 0 : index
    %c0_18 = arith.constant 0 : index
    %50 = vector.load %arg5[%c0_17, %c0_18] : memref<64x64xf32, #tpu.memory_space<vmem>>, vector<64x64xf32>
    %cst_19 = arith.constant dense<0.000000e+00> : vector<128x64xf32>
    %51 = tpu.matmul %49, %50, %cst_19 {dimension_numbers = #tpu.dot_dimension_numbers<[1], [0], [0], [1], [0, 0, 1, 1], [], []>, precision = #tpu.contract_precision<fp32>} : vector<128x64xf32>, vector<64x64xf32>, vector<128x64xf32> -> vector<128x64xf32>
    %52 = vector.shape_cast %51 : vector<128x64xf32> to vector<8x16x64xf32>
    %cst_20 = arith.constant dense<0xFF800000> : vector<8x64xf32>
    %53 = vector.multi_reduction <maximumf>, %52, %cst_20 [1] : vector<8x16x64xf32> to vector<8x64xf32>
    %c0_21 = arith.constant 0 : index
    %c0_22 = arith.constant 0 : index
    %54 = vector.load %arg6[%c0_21, %c0_22] : memref<1x64xf32, #tpu.memory_space<vmem>>, vector<1x64xf32>
    %55 = vector.broadcast %54 : vector<1x64xf32> to vector<8x64xf32>
    %56 = arith.addf %53, %55 : vector<8x64xf32>
    %cst_23 = arith.constant 0.000000e+00 : f32
    %57 = vector.broadcast %cst_23 : f32 to vector<8x64xf32>
    %58 = arith.maximumf %56, %57 : vector<8x64xf32>
    %c0_24 = arith.constant 0 : index
    %c0_25 = arith.constant 0 : index
    %59 = vector.load %arg7[%c0_24, %c0_25] : memref<8x64xf32, #tpu.memory_space<vmem>>, vector<8x64xf32>
    tpu.vector_store %arg7[%c0_24, %c0_25], %58 {strides = array<i32>} : memref<8x64xf32, #tpu.memory_space<vmem>>, vector<8x64xf32>,
    return
  }
  func.func @transform_0(%arg0: i32) -> (i32, i32) {
    %c0_i32 = arith.constant 0 : i32
    %c0_i32_0 = arith.constant 0 : i32
    return %arg0, %c0_i32 : i32, i32
  }
  func.func @transform_1(%arg0: i32) -> (i32, i32) {
    %c0_i32 = arith.constant 0 : i32
    %c0_i32_0 = arith.constant 0 : i32
    %c0_i32_1 = arith.constant 0 : i32
    return %c0_i32, %c0_i32_0 : i32, i32
  }
  func.func @transform_2(%arg0: i32) -> (i32, i32) {
    %c0_i32 = arith.constant 0 : i32
    %c0_i32_0 = arith.constant 0 : i32
    %c0_i32_1 = arith.constant 0 : i32
    return %c0_i32, %c0_i32_0 : i32, i32
  }
  func.func @transform_3(%arg0: i32) -> (i32, i32, i32) {
    %c0_i32 = arith.constant 0 : i32
    %c0_i32_0 = arith.constant 0 : i32
    %c0_i32_1 = arith.constant 0 : i32
    %c0_i32_2 = arith.constant 0 : i32
    return %c0_i32, %c0_i32_0, %c0_i32_1 : i32, i32, i32
  }
  func.func @transform_4(%arg0: i32) -> (i32, i32) {
    %c0_i32 = arith.constant 0 : i32
    %c0_i32_0 = arith.constant 0 : i32
    %c0_i32_1 = arith.constant 0 : i32
    return %c0_i32, %c0_i32_0 : i32, i32
  }
  func.func @transform_5(%arg0: i32) -> (i32, i32) {
    %c0_i32 = arith.constant 0 : i32
    %c0_i32_0 = arith.constant 0 : i32
    %c0_i32_1 = arith.constant 0 : i32
    return %c0_i32, %c0_i32_0 : i32, i32
  }
  func.func @transform_6(%arg0: i32) -> (i32, i32) {
    %c0_i32 = arith.constant 0 : i32
    %c0_i32_0 = arith.constant 0 : i32
    return %arg0, %c0_i32 : i32, i32
  }
}

</mosaic_0001>

<llo_original>
// kernel: tpu_custom_call.1
$region0: #{tpu_custom_call.1}
  #allocation0 [shape = 'u32[]', space=smem, size = 0x4, offset = 0x4, fixed_abs, tag = 'smem constant byte address 0x4 - core index']
  #allocation1 [shape = 'u32[144,128]{1,0:T(1,128)}', space=vmem, size = 0x12000, scoped, tag = 'internal scratch']
  %s0 = inlined_call_operand.vmem [shape: s32[16,16], index: 0, kind: input, shape index: {}]
  %s1 = inlined_call_operand.vmem [shape: bf16[128,64], index: 1, kind: input, shape index: {}]
  %s2 = inlined_call_operand.vmem [shape: bf16[128,64], index: 2, kind: input, shape index: {}]
  %s3 = inlined_call_operand.vmem [shape: f32[5,16,64], index: 3, kind: input, shape index: {}]
  %s4 = inlined_call_operand.vmem [shape: f32[64,64], index: 4, kind: input, shape index: {}]
  %s5 = inlined_call_operand.vmem [shape: f32[1,64], index: 5, kind: input, shape index: {}]
  %s6 = inlined_call_operand.hbm [shape: f32[16,64], index: 6, kind: output, shape index: {}]
  %s7 = sld [smem:[#allocation0]]
  $region57: #{tpu_custom_call.1} parent=0
    _
  %s9 = ssub.s32 1, %s7
  %s10 = scalar_select 0, %s9, %s7
  $region1: #{tpu_custom_call.1} parent=0
    #allocation2 [shape = 'u8[8192]{0}', space=vmem, size = 0x2000, scoped, tag = 'output window, operand 0']
    #allocation3 [shape = 's32[2]{0}', space=sflag, size = 0x8, scoped, tag = 'scoped memory for tpu_custom_call.1']
    %11 = vsyncpa [#allocation3], 0
    %s12 = scalar_lea.sflag [#allocation3], 1
    %13 = vsyncpa %s12, 0
    loop: start=0, step=1, limit=4
    $region2: #{tpu_custom_call.1} parent=1 // loop_pre_header
      _
    $region3: #{tpu_custom_call.1} parent=1 // loop_header
      %s15 = sphi 0, %s19
      %p16 = scmp.ge.s32.totalorder %s15, 4
      %s25 = sphi 0, %s27
      %s28 = sphi 0, %s25
      %s29 = sphi 0, %s28
      %s45 = sphi 0, %s29
      %s49 = sphi 0, %s49
      %s51 = sphi 0, %s49
      %s52 = sphi 0, %s51
      %s66 = sphi 0, %s52
      %s70 = sphi 0, %s70
      %s72 = sphi 0, %s70
      %s73 = sphi 0, %s72
      %s87 = sphi 0, %s73
      %s91 = sphi 0, %s91
      %s93 = sphi 0, %s91
      %s94 = sphi 0, %s93
      %s108 = sphi 0, %s94
      %s112 = sphi 0, %s112
      %s114 = sphi 0, %s112
      %s115 = sphi 0, %s114
      %s129 = sphi 0, %s115
      %s133 = sphi 0, %s133
      %s135 = sphi 0, %s133
      %s136 = sphi 0, %s135
      %s150 = sphi 0, %s136
      %s156 = sphi 0, %s158
      %s159 = sphi 0, %s156
      %s160 = sphi 0, %s159
      %s176 = sphi 0, %s160
    $region4: #{tpu_custom_call.1} parent=1 // loop_header_branch
      %18 = sbr.rel (%p16) target = $region8
    $region5: #{tpu_custom_call.1} parent=1 // loop_body
      %s20 = ssub.s32 %s15, 1
      %s21 = ssub.s32 %s15, 2
      %s22 = sadd.s32 %s15, 1
      %s23 = ssub.s32 %s15, %s22
      %p24 = scmp.eq.s32.totalorder %s23, 0
      %s26 = sadd.s32 %s25, 1
      %s27 = scalar_select %p24, %s25, %s26
      %p30 = pneg %p24
      %p31 = scmp.eq.s32.totalorder %s15, 1
      %p32 = por %p30, %p31
      %p33 = scmp.ne.s32.totalorder %s25, %s28
      %p34 = scmp.eq.s32.totalorder %s15, 0
      %p35 = por %p33, %p34
      %p36 = scmp.ne.s32.totalorder %s25, %s28
      %p37 = scmp.eq.s32.totalorder %s20, 1
      %p38 = por %p36, %p37
      %p39 = scmp.ne.s32.totalorder %s28, %s29
      %p40 = scmp.eq.s32.totalorder %s20, 0
      %p41 = por %p39, %p40
      %p42 = scmp.ne.s32.totalorder %s28, %s29
      %p43 = scmp.eq.s32.totalorder %s21, 1
      %p44 = por %p42, %p43
      %p46 = scmp.ne.s32.totalorder %s29, %s45
      %p47 = scmp.eq.s32.totalorder %s21, 0
      %p48 = por %p46, %p47
      %s50 = sadd.s32 %s49, 1
      %p53 = scmp.eq.s32.totalorder %s15, 1
      %p54 = scmp.ne.s32.totalorder %s49, %s51
      %p55 = scmp.eq.s32.totalorder %s15, 0
      %p56 = por %p54, %p55
      %p57 = scmp.ne.s32.totalorder %s49, %s51
      %p58 = scmp.eq.s32.totalorder %s20, 1
      %p59 = por %p57, %p58
      %p60 = scmp.ne.s32.totalorder %s51, %s52
      %p61 = scmp.eq.s32.totalorder %s20, 0
      %p62 = por %p60, %p61
      %p63 = scmp.ne.s32.totalorder %s51, %s52
      %p64 = scmp.eq.s32.totalorder %s21, 1
      %p65 = por %p63, %p64
      %p67 = scmp.ne.s32.totalorder %s52, %s66
      %p68 = scmp.eq.s32.totalorder %s21, 0
      %p69 = por %p67, %p68
      %s71 = sadd.s32 %s70, 1
      %p74 = scmp.eq.s32.totalorder %s15, 1
      %p75 = scmp.ne.s32.totalorder %s70, %s72
      %p76 = scmp.eq.s32.totalorder %s15, 0
      %p77 = por %p75, %p76
      %p78 = scmp.ne.s32.totalorder %s70, %s72
      %p79 = scmp.eq.s32.totalorder %s20, 1
      %p80 = por %p78, %p79
      %p81 = scmp.ne.s32.totalorder %s72, %s73
      %p82 = scmp.eq.s32.totalorder %s20, 0
      %p83 = por %p81, %p82
      %p84 = scmp.ne.s32.totalorder %s72, %s73
      %p85 = scmp.eq.s32.totalorder %s21, 1
      %p86 = por %p84, %p85
      %p88 = scmp.ne.s32.totalorder %s73, %s87
      %p89 = scmp.eq.s32.totalorder %s21, 0
      %p90 = por %p88, %p89
      %s92 = sadd.s32 %s91, 1
      %p95 = scmp.eq.s32.totalorder %s15, 1
      %p96 = scmp.ne.s32.totalorder %s91, %s93
      %p97 = scmp.eq.s32.totalorder %s15, 0
      %p98 = por %p96, %p97
      %p99 = scmp.ne.s32.totalorder %s91, %s93
      %p100 = scmp.eq.s32.totalorder %s20, 1
      %p101 = por %p99, %p100
      %p102 = scmp.ne.s32.totalorder %s93, %s94
      %p103 = scmp.eq.s32.totalorder %s20, 0
      %p104 = por %p102, %p103
      %p105 = scmp.ne.s32.totalorder %s93, %s94
      %p106 = scmp.eq.s32.totalorder %s21, 1
      %p107 = por %p105, %p106
      %p109 = scmp.ne.s32.totalorder %s94, %s108
      %p110 = scmp.eq.s32.totalorder %s21, 0
      %p111 = por %p109, %p110
      %s113 = sadd.s32 %s112, 1
      %p116 = scmp.eq.s32.totalorder %s15, 1
      %p117 = scmp.ne.s32.totalorder %s112, %s114
      %p118 = scmp.eq.s32.totalorder %s15, 0
      %p119 = por %p117, %p118
      %p120 = scmp.ne.s32.totalorder %s112, %s114
      %p121 = scmp.eq.s32.totalorder %s20, 1
      %p122 = por %p120, %p121
      %p123 = scmp.ne.s32.totalorder %s114, %s115
      %p124 = scmp.eq.s32.totalorder %s20, 0
      %p125 = por %p123, %p124
      %p126 = scmp.ne.s32.totalorder %s114, %s115
      %p127 = scmp.eq.s32.totalorder %s21, 1
      %p128 = por %p126, %p127
      %p130 = scmp.ne.s32.totalorder %s115, %s129
      %p131 = scmp.eq.s32.totalorder %s21, 0
      %p132 = por %p130, %p131
      %s134 = sadd.s32 %s133, 1
      %p137 = scmp.eq.s32.totalorder %s15, 1
      %p138 = scmp.ne.s32.totalorder %s133, %s135
      %p139 = scmp.eq.s32.totalorder %s15, 0
      %p140 = por %p138, %p139
      %p141 = scmp.ne.s32.totalorder %s133, %s135
      %p142 = scmp.eq.s32.totalorder %s20, 1
      %p143 = por %p141, %p142
      %p144 = scmp.ne.s32.totalorder %s135, %s136
      %p145 = scmp.eq.s32.totalorder %s20, 0
      %p146 = por %p144, %p145
      %p147 = scmp.ne.s32.totalorder %s135, %s136
      %p148 = scmp.eq.s32.totalorder %s21, 1
      %p149 = por %p147, %p148
      %p151 = scmp.ne.s32.totalorder %s136, %s150
      %p152 = scmp.eq.s32.totalorder %s21, 0
      %p153 = por %p151, %p152
      %s154 = ssub.s32 %s15, %s22
      %p155 = scmp.eq.s32.totalorder %s154, 0
      %s157 = sadd.s32 %s156, 1
      %s158 = scalar_select %p155, %s156, %s157
      %p161 = pneg %p155
      %p162 = scmp.eq.s32.totalorder %s15, 1
      %p163 = por %p161, %p162
      %p164 = scmp.ne.s32.totalorder %s156, %s159
      %p165 = scmp.eq.s32.totalorder %s15, 0
      %p166 = por %p164, %p165
      %p167 = scmp.ne.s32.totalorder %s156, %s159
      %p168 = scmp.eq.s32.totalorder %s20, 1
      %p169 = por %p167, %p168
      %p170 = scmp.ne.s32.totalorder %s159, %s160
      %p171 = scmp.eq.s32.totalorder %s20, 0
      %p172 = por %p170, %p171
      %p173 = scmp.ne.s32.totalorder %s159, %s160
      %p174 = scmp.eq.s32.totalorder %s21, 1
      %p175 = por %p173, %p174
      %p177 = scmp.ne.s32.totalorder %s160, %s176
      %p178 = scmp.eq.s32.totalorder %s21, 0
      %p179 = por %p177, %p178
      %p180 = scmp.le.s32.totalorder 1, %s15
      %p181 = scmp.lt.s32.totalorder %s15, 3
      %p182 = pnand %p180, %p181
      %p183 = pneg %p182
      // Predicated region
      $region9: #{tpu_custom_call.1} parent=5 // pred_check
        _
      $region10: #{tpu_custom_call.1} parent=5 // pred_check_branch
        %185 = sbr.rel (%p182) target = $region12
      $region11: #{tpu_custom_call.1} parent=5 // pred_region
        %s186 = ssub.s32 %s15, 1
        // Predicated region
        $region13: #{tpu_custom_call.1} parent=11 // pred_check
          %p187 = pneg %p62
        $region14: #{tpu_custom_call.1} parent=11 // pred_check_branch
          %189 = sbr.rel (%p187) target = $region16
        $region15: #{tpu_custom_call.1} parent=11 // pred_region
          _
        $region16: #{tpu_custom_call.1} parent=11 // pred_fallthru
          _
        // Predicated region
        $region17: #{tpu_custom_call.1} parent=11 // pred_check
          %p190 = pneg %p83
        $region18: #{tpu_custom_call.1} parent=11 // pred_check_branch
          %192 = sbr.rel (%p190) target = $region20
        $region19: #{tpu_custom_call.1} parent=11 // pred_region
          _
        $region20: #{tpu_custom_call.1} parent=11 // pred_fallthru
          _
        // Predicated region
        $region21: #{tpu_custom_call.1} parent=11 // pred_check
          %p193 = pneg %p104
        $region22: #{tpu_custom_call.1} parent=11 // pred_check_branch
          %195 = sbr.rel (%p193) target = $region24
        $region23: #{tpu_custom_call.1} parent=11 // pred_region
          _
        $region24: #{tpu_custom_call.1} parent=11 // pred_fallthru
          _
        // Predicated region
        $region25: #{tpu_custom_call.1} parent=11 // pred_check
          %p196 = pneg %p125
        $region26: #{tpu_custom_call.1} parent=11 // pred_check_branch
          %198 = sbr.rel (%p196) target = $region28
        $region27: #{tpu_custom_call.1} parent=11 // pred_region
          _
        $region28: #{tpu_custom_call.1} parent=11 // pred_fallthru
          _
        // Predicated region
        $region29: #{tpu_custom_call.1} parent=11 // pred_check
          %p199 = pneg %p146
        $region30: #{tpu_custom_call.1} parent=11 // pred_check_branch
          %201 = sbr.rel (%p199) target = $region32
        $region31: #{tpu_custom_call.1} parent=11 // pred_region
          _
        $region32: #{tpu_custom_call.1} parent=11 // pred_fallthru
          _
      $region12: #{tpu_custom_call.1} parent=5 // pred_fallthru
        _
      %p202 = scmp.lt.s32.totalorder %s15, 2
      // Predicated region
      $region33: #{tpu_custom_call.1} parent=5 // pred_check
        %p203 = pneg %p202
      $region34: #{tpu_custom_call.1} parent=5 // pred_check_branch
        %205 = sbr.rel (%p203) target = $region36
      $region35: #{tpu_custom_call.1} parent=5 // pred_region
        // Predicated region
        $region37: #{tpu_custom_call.1} parent=35 // pred_check
          %p206 = pneg %p35
        $region38: #{tpu_custom_call.1} parent=35 // pred_check_branch
          %208 = sbr.rel (%p206) target = $region40
        $region39: #{tpu_custom_call.1} parent=35 // pred_region
          %p209 = scmp.lt.s32.totalorder %s15, 1
          %s210 = scalar_select %p209, %s15, 1
          %s211 = smul.addr %s210, 8
          %s212 = scalar_lea.vmem %s0, %s211
        $region40: #{tpu_custom_call.1} parent=35 // pred_fallthru
          _
      $region36: #{tpu_custom_call.1} parent=5 // pred_fallthru
        _
      %p213 = scmp.le.s32.totalorder 1, %s15
      %p214 = scmp.lt.s32.totalorder %s15, 3
      %p215 = pnand %p213, %p214
      %p216 = pneg %p215
      // Predicated region
      $region41: #{tpu_custom_call.1} parent=5 // pred_check
        _
      $region42: #{tpu_custom_call.1} parent=5 // pred_check_branch
        %218 = sbr.rel (%p215) target = $region44
      $region43: #{tpu_custom_call.1} parent=5 // pred_region
        %s219 = ssub.s32 %s15, 1
        %p220 = scmp.lt.s32.totalorder %s20, 1
        %s221 = scalar_select %p220, %s20, 1
        %s222 = smul.addr %s221, 8
        %s223 = scalar_lea.vmem %s0, %s222
        %p224 = pneg %p41
        %p225 = pneg %p38
        %p226 = pneg %p62
        %p227 = pneg %p59
        %p228 = pneg %p83
        %p229 = pneg %p80
        %p230 = pneg %p104
        %p231 = pneg %p101
        %p232 = pneg %p125
        %p233 = pneg %p122
        %p234 = pneg %p146
        %p235 = pneg %p143
        %p236 = pneg %p172
        %p237 = pneg %p169
        %s238 = sand.u32 %s159, 1
        %s239 = scalar_lea.sflag [#allocation3], %s238
        %s240 = sand.u32 %s159, 1
        %s241 = smul.addr %s240, 8
        %s242 = scalar_lea.vmem [#allocation2], %s241
        %p243 = scmp.lt.s32.totalorder %s20, 1
        %s244 = scalar_select %p243, %s20, 1
        %s245 = smul.addr %s244, 8
        %s246 = scalar_lea.vmem %s0, %s245
        %v248 = vld [vmem:[%s246] sm:$0xff]
        %v249 = vlaneseq
        %v250 = vand.u32 %v249, 127
        %v251 = vlaneseq
        %v252 = vshrl.u32 %v251, 7
        %v253 = vsub.s32 0, %v252
        %v254 = vrot.slane %v248, %v253
        %256 = vbcast.lane.b32.xlu0 %v254, 256
        %v257 = vpop.permute.xlu0 %256
        %s259 = sor.u32 256, 8
        %260 = vbcast.lane.b32.xlu0 %v254, %s259
        %v261 = vpop.permute.xlu0 %260
        %v262 = vlaneseq
        %v263 = vshrl.u32 %v262, 7
        %v264 = vsub.s32 1, %v263
        %v265 = vrot.slane %v248, %v264
        %267 = vbcast.lane.b32.xlu0 %v265, 256
        %v268 = vpop.permute.xlu0 %267
        %s270 = sor.u32 256, 8
        %271 = vbcast.lane.b32.xlu0 %v265, %s270
        %v272 = vpop.permute.xlu0 %271
        %v273 = vlaneseq
        %v274 = vshrl.u32 %v273, 7
        %v275 = vsub.s32 2, %v274
        %v276 = vrot.slane %v248, %v275
        %278 = vbcast.lane.b32.xlu0 %v276, 256
        %v279 = vpop.permute.xlu0 %278
        %s281 = sor.u32 256, 8
        %282 = vbcast.lane.b32.xlu0 %v276, %s281
        %v283 = vpop.permute.xlu0 %282
        %v284 = vlaneseq
        %v285 = vshrl.u32 %v284, 7
        %v286 = vsub.s32 3, %v285
        %v287 = vrot.slane %v248, %v286
        %289 = vbcast.lane.b32.xlu0 %v287, 256
        %v290 = vpop.permute.xlu0 %289
        %s292 = sor.u32 256, 8
        %293 = vbcast.lane.b32.xlu0 %v287, %s292
        %v294 = vpop.permute.xlu0 %293
        %v295 = vlaneseq
        %v296 = vshrl.u32 %v295, 7
        %v297 = vsub.s32 4, %v296
        %v298 = vrot.slane %v248, %v297
        %300 = vbcast.lane.b32.xlu0 %v298, 256
        %v301 = vpop.permute.xlu0 %300
        %s303 = sor.u32 256, 8
        %304 = vbcast.lane.b32.xlu0 %v298, %s303
        %v305 = vpop.permute.xlu0 %304
        %v306 = vlaneseq
        %v307 = vshrl.u32 %v306, 7
        %v308 = vsub.s32 5, %v307
        %v309 = vrot.slane %v248, %v308
        %311 = vbcast.lane.b32.xlu0 %v309, 256
        %v312 = vpop.permute.xlu0 %311
        %s314 = sor.u32 256, 8
        %315 = vbcast.lane.b32.xlu0 %v309, %s314
        %v316 = vpop.permute.xlu0 %315
        %v317 = vlaneseq
        %v318 = vshrl.u32 %v317, 7
        %v319 = vsub.s32 6, %v318
        %v320 = vrot.slane %v248, %v319
        %322 = vbcast.lane.b32.xlu0 %v320, 256
        %v323 = vpop.permute.xlu0 %322
        %s325 = sor.u32 256, 8
        %326 = vbcast.lane.b32.xlu0 %v320, %s325
        %v327 = vpop.permute.xlu0 %326
        %v328 = vlaneseq
        %v329 = vshrl.u32 %v328, 7
        %v330 = vsub.s32 7, %v329
        %v331 = vrot.slane %v248, %v330
        %333 = vbcast.lane.b32.xlu0 %v331, 256
        %v334 = vpop.permute.xlu0 %333
        %s336 = sor.u32 256, 8
        %337 = vbcast.lane.b32.xlu0 %v331, %s336
        %v338 = vpop.permute.xlu0 %337
        %vm339 = vcmp.eq.s32.totalorder %v257, %v250
        %vm340 = vcmp.eq.s32.totalorder %v261, %v250
        %vm341 = vcmp.eq.s32.totalorder %v268, %v250
        %vm342 = vcmp.eq.s32.totalorder %v272, %v250
        %vm343 = vcmp.eq.s32.totalorder %v279, %v250
        %vm344 = vcmp.eq.s32.totalorder %v283, %v250
        %vm345 = vcmp.eq.s32.totalorder %v290, %v250
        %vm346 = vcmp.eq.s32.totalorder %v294, %v250
        %vm347 = vcmp.eq.s32.totalorder %v301, %v250
        %vm348 = vcmp.eq.s32.totalorder %v305, %v250
        %vm349 = vcmp.eq.s32.totalorder %v312, %v250
        %vm350 = vcmp.eq.s32.totalorder %v316, %v250
        %vm351 = vcmp.eq.s32.totalorder %v323, %v250
        %vm352 = vcmp.eq.s32.totalorder %v327, %v250
        %vm353 = vcmp.eq.s32.totalorder %v334, %v250
        %vm354 = vcmp.eq.s32.totalorder %v338, %v250
        %v355 = vsel %vm339, 1, 0
        %v356 = vsel %vm340, 1, 0
        %v357 = vsel %vm341, 1, 0
        %v358 = vsel %vm342, 1, 0
        %v359 = vsel %vm343, 1, 0
        %v360 = vsel %vm344, 1, 0
        %v361 = vsel %vm345, 1, 0
        %v362 = vsel %vm346, 1, 0
        %v363 = vsel %vm347, 1, 0
        %v364 = vsel %vm348, 1, 0
        %v365 = vsel %vm349, 1, 0
        %v366 = vsel %vm350, 1, 0
        %v367 = vsel %vm351, 1, 0
        %v368 = vsel %vm352, 1, 0
        %v369 = vsel %vm353, 1, 0
        %v370 = vsel %vm354, 1, 0
        %v371 = vcvt.s32.f32 %v355
        %v372 = vcvt.s32.f32 %v356
        %v373 = vcvt.s32.f32 %v357
        %v374 = vcvt.s32.f32 %v358
        %v375 = vcvt.s32.f32 %v359
        %v376 = vcvt.s32.f32 %v360
        %v377 = vcvt.s32.f32 %v361
        %v378 = vcvt.s32.f32 %v362
        %v379 = vcvt.s32.f32 %v363
        %v380 = vcvt.s32.f32 %v364
        %v381 = vcvt.s32.f32 %v365
        %v382 = vcvt.s32.f32 %v366
        %v383 = vcvt.s32.f32 %v367
        %v384 = vcvt.s32.f32 %v368
        %v385 = vcvt.s32.f32 %v369
        %v386 = vcvt.s32.f32 %v370
        %v387 = vpack.c.bf16 %v372, %v371
        %v388 = vpack.c.bf16 %v374, %v373
        %v389 = vpack.c.bf16 %v376, %v375
        %v390 = vpack.c.bf16 %v378, %v377
        %v391 = vpack.c.bf16 %v380, %v379
        %v392 = vpack.c.bf16 %v382, %v381
        %v393 = vpack.c.bf16 %v384, %v383
        %v394 = vpack.c.bf16 %v386, %v385
        %v395 = vld [vmem:[%s1] sm:$0xf]
        %v396 = vld [vmem:[%s1 + $0x4] sm:$0xf]
        %v397 = vld [vmem:[%s1 + $0x8] sm:$0xf]
        %v398 = vld [vmem:[%s1 + $0xc] sm:$0xf]
        %v399 = vld [vmem:[%s1 + $0x10] sm:$0xf]
        %v400 = vld [vmem:[%s1 + $0x14] sm:$0xf]
        %v401 = vld [vmem:[%s1 + $0x18] sm:$0xf]
        %v402 = vld [vmem:[%s1 + $0x1c] sm:$0xf]
        %v403 = vld [vmem:[%s1 + $0x20] sm:$0xf]
        %v404 = vld [vmem:[%s1 + $0x24] sm:$0xf]
        %v405 = vld [vmem:[%s1 + $0x28] sm:$0xf]
        %v406 = vld [vmem:[%s1 + $0x2c] sm:$0xf]
        %v407 = vld [vmem:[%s1 + $0x30] sm:$0xf]
        %v408 = vld [vmem:[%s1 + $0x34] sm:$0xf]
        %v409 = vld [vmem:[%s1 + $0x38] sm:$0xf]
        %v410 = vld [vmem:[%s1 + $0x3c] sm:$0xf]
        %v411 = vld [vmem:[%s2] sm:$0xf]
        %v412 = vld [vmem:[%s2 + $0x4] sm:$0xf]
        %v413 = vld [vmem:[%s2 + $0x8] sm:$0xf]
        %v414 = vld [vmem:[%s2 + $0xc] sm:$0xf]
        %v415 = vld [vmem:[%s2 + $0x10] sm:$0xf]
        %v416 = vld [vmem:[%s2 + $0x14] sm:$0xf]
        %v417 = vld [vmem:[%s2 + $0x18] sm:$0xf]
        %v418 = vld [vmem:[%s2 + $0x1c] sm:$0xf]
        %v419 = vld [vmem:[%s2 + $0x20] sm:$0xf]
        %v420 = vld [vmem:[%s2 + $0x24] sm:$0xf]
        %v421 = vld [vmem:[%s2 + $0x28] sm:$0xf]
        %v422 = vld [vmem:[%s2 + $0x2c] sm:$0xf]
        %v423 = vld [vmem:[%s2 + $0x30] sm:$0xf]
        %v424 = vld [vmem:[%s2 + $0x34] sm:$0xf]
        %v425 = vld [vmem:[%s2 + $0x38] sm:$0xf]
        %v426 = vld [vmem:[%s2 + $0x3c] sm:$0xf]
        %v443 = vunpack.c.l.b16 %v411
        %v444 = vunpack.c.l.b16 %v412
        %v445 = vunpack.c.l.b16 %v413
        %v446 = vunpack.c.l.b16 %v414
        %v447 = vunpack.c.l.b16 %v415
        %v448 = vunpack.c.l.b16 %v416
        %v449 = vunpack.c.l.b16 %v417
        %v450 = vunpack.c.l.b16 %v418
        %v451 = vunpack.c.l.b16 %v419
        %v452 = vunpack.c.l.b16 %v420
        %v453 = vunpack.c.l.b16 %v421
        %v454 = vunpack.c.l.b16 %v422
        %v455 = vunpack.c.l.b16 %v423
        %v456 = vunpack.c.l.b16 %v424
        %v457 = vunpack.c.l.b16 %v425
        %v458 = vunpack.c.l.b16 %v426
        %v459 = vpack.c.b16 %v444, %v443
        %v460 = vpack.c.b16 %v446, %v445
        %v461 = vpack.c.b16 %v448, %v447
        %v462 = vpack.c.b16 %v450, %v449
        %v463 = vpack.c.b16 %v452, %v451
        %v464 = vpack.c.b16 %v454, %v453
        %v465 = vpack.c.b16 %v456, %v455
        %v466 = vpack.c.b16 %v458, %v457
        %475 = vmatprep.subr.bf16.mxu0 0
        %476 = vmatpush1.bf16.msra.mxu0 %v459
        %477 = vmatprep.subr.bf16.mxu0 0
        %478 = vmatpush1.bf16.msra.mxu0 %v460
        %479 = vmatprep.subr.bf16.mxu0 0
        %480 = vmatpush1.bf16.msra.mxu0 %v461
        %481 = vmatprep.subr.bf16.mxu0 0
        %482 = vmatpush1.bf16.msra.mxu0 %v462
        %483 = vmatprep.subr.bf16.mxu0 0
        %484 = vmatpush1.bf16.msra.mxu0 %v463
        %485 = vmatprep.subr.bf16.mxu0 0
        %486 = vmatpush1.bf16.msra.mxu0 %v464
        %487 = vmatprep.subr.bf16.mxu0 0
        %488 = vmatpush1.bf16.msra.mxu0 %v465
        %489 = vmatprep.subr.bf16.mxu0 0
        %490 = vmatpush1.bf16.msra.mxu0 %v466
        %491 = vmatprep.subr.bf16.mxu0 0
        %492 = vmatpush1.bf16.msra.mxu0 0
        %493 = vmatprep.subr.bf16.mxu0 0
        %494 = vmatpush1.bf16.msra.mxu0 0
        %495 = vmatprep.subr.bf16.mxu0 0
        %496 = vmatpush1.bf16.msra.mxu0 0
        %497 = vmatprep.subr.bf16.mxu0 0
        %498 = vmatpush1.bf16.msra.mxu0 0
        %499 = vmatprep.subr.bf16.mxu0 0
        %500 = vmatpush1.bf16.msra.mxu0 0
        %501 = vmatprep.subr.bf16.mxu0 0
        %502 = vmatpush1.bf16.msra.mxu0 0
        %503 = vmatprep.subr.bf16.mxu0 0
        %504 = vmatpush1.bf16.msra.mxu0 0
        %505 = vmatprep.subr.bf16.mxu0 0
        %506 = vmatpush1.bf16.msra.mxu0 0
        %507 = vmatprep.mubr.bf16.mxu0 0
        %508 = vmatmul.mubr.bf16.gmra.mrb[0].mxu0 %v387
        %v509 = vpop.f32.mrb[0].mxu0
        %v510 = vadd.f32 0.0, %v509
        %v511 = vpop.f32.mrb[0].mxu0
        %v512 = vpop.f32.mrb[0].mxu0
        %v513 = vadd.f32 0.0, %v512
        %v514 = vpop.f32.mrb[0].mxu0
        %515 = vmatprep.mubr.bf16.mxu0 0
        %516 = vmatmul.mubr.bf16.gmra.mrb[0].mxu0 %v388
        %v517 = vpop.f32.mrb[0].mxu0
        %v518 = vadd.f32 0.0, %v517
        %v519 = vpop.f32.mrb[0].mxu0
        %v520 = vpop.f32.mrb[0].mxu0
        %v521 = vadd.f32 0.0, %v520
        %v522 = vpop.f32.mrb[0].mxu0
        %523 = vmatprep.mubr.bf16.mxu0 0
        %524 = vmatmul.mubr.bf16.gmra.mrb[0].mxu0 %v389
        %v525 = vpop.f32.mrb[0].mxu0
        %v526 = vadd.f32 0.0, %v525
        %v527 = vpop.f32.mrb[0].mxu0
        %v528 = vpop.f32.mrb[0].mxu0
        %v529 = vadd.f32 0.0, %v528
        %v530 = vpop.f32.mrb[0].mxu0
        %531 = vmatprep.mubr.bf16.mxu0 0
        %532 = vmatmul.mubr.bf16.gmra.mrb[0].mxu0 %v390
        %v533 = vpop.f32.mrb[0].mxu0
        %v534 = vadd.f32 0.0, %v533
        %v535 = vpop.f32.mrb[0].mxu0
        %v536 = vpop.f32.mrb[0].mxu0
        %v537 = vadd.f32 0.0, %v536
        %v538 = vpop.f32.mrb[0].mxu0
        %539 = vmatprep.mubr.bf16.mxu0 0
        %540 = vmatmul.mubr.bf16.gmra.mrb[0].mxu0 %v391
        %v541 = vpop.f32.mrb[0].mxu0
        %v542 = vadd.f32 0.0, %v541
        %v543 = vpop.f32.mrb[0].mxu0
        %v544 = vpop.f32.mrb[0].mxu0
        %v545 = vadd.f32 0.0, %v544
        %v546 = vpop.f32.mrb[0].mxu0
        %547 = vmatprep.mubr.bf16.mxu0 0
        %548 = vmatmul.mubr.bf16.gmra.mrb[0].mxu0 %v392
        %v549 = vpop.f32.mrb[0].mxu0
        %v550 = vadd.f32 0.0, %v549
        %v551 = vpop.f32.mrb[0].mxu0
        %v552 = vpop.f32.mrb[0].mxu0
        %v553 = vadd.f32 0.0, %v552
        %v554 = vpop.f32.mrb[0].mxu0
        %555 = vmatprep.mubr.bf16.mxu0 0
        %556 = vmatmul.mubr.bf16.gmra.mrb[0].mxu0 %v393
        %v557 = vpop.f32.mrb[0].mxu0
        %v558 = vadd.f32 0.0, %v557
        %v559 = vpop.f32.mrb[0].mxu0
        %v560 = vpop.f32.mrb[0].mxu0
        %v561 = vadd.f32 0.0, %v560
        %v562 = vpop.f32.mrb[0].mxu0
        %563 = vmatprep.mubr.bf16.mxu0 0
        %564 = vmatmul.mubr.bf16.gmra.mrb[0].mxu0 %v394
        %v565 = vpop.f32.mrb[0].mxu0
        %v566 = vadd.f32 0.0, %v565
        %v567 = vpop.f32.mrb[0].mxu0
        %v568 = vpop.f32.mrb[0].mxu0
        %v569 = vadd.f32 0.0, %v568
        %v570 = vpop.f32.mrb[0].mxu0
        %571 = vdwg.mxu0
        %v588 = vunpack.c.l.b16 %v395
        %v589 = vunpack.c.l.b16 %v396
        %v590 = vunpack.c.l.b16 %v397
        %v591 = vunpack.c.l.b16 %v398
        %v592 = vunpack.c.l.b16 %v399
        %v593 = vunpack.c.l.b16 %v400
        %v594 = vunpack.c.l.b16 %v401
        %v595 = vunpack.c.l.b16 %v402
        %v596 = vunpack.c.l.b16 %v403
        %v597 = vunpack.c.l.b16 %v404
        %v598 = vunpack.c.l.b16 %v405
        %v599 = vunpack.c.l.b16 %v406
        %v600 = vunpack.c.l.b16 %v407
        %v601 = vunpack.c.l.b16 %v408
        %v602 = vunpack.c.l.b16 %v409
        %v603 = vunpack.c.l.b16 %v410
        %v604 = vpack.c.b16 %v589, %v588
        %v605 = vpack.c.b16 %v591, %v590
        %v606 = vpack.c.b16 %v593, %v592
        %v607 = vpack.c.b16 %v595, %v594
        %v608 = vpack.c.b16 %v597, %v596
        %v609 = vpack.c.b16 %v599, %v598
        %v610 = vpack.c.b16 %v601, %v600
        %v611 = vpack.c.b16 %v603, %v602
        %620 = vmatprep.subr.bf16.mxu0 0
        %621 = vmatpush1.bf16.msra.mxu0 %v604
        %622 = vmatprep.subr.bf16.mxu0 0
        %623 = vmatpush1.bf16.msra.mxu0 %v605
        %624 = vmatprep.subr.bf16.mxu0 0
        %625 = vmatpush1.bf16.msra.mxu0 %v606
        %626 = vmatprep.subr.bf16.mxu0 0
        %627 = vmatpush1.bf16.msra.mxu0 %v607
        %628 = vmatprep.subr.bf16.mxu0 0
        %629 = vmatpush1.bf16.msra.mxu0 %v608
        %630 = vmatprep.subr.bf16.mxu0 0
        %631 = vmatpush1.bf16.msra.mxu0 %v609
        %632 = vmatprep.subr.bf16.mxu0 0
        %633 = vmatpush1.bf16.msra.mxu0 %v610
        %634 = vmatprep.subr.bf16.mxu0 0
        %635 = vmatpush1.bf16.msra.mxu0 %v611
        %636 = vmatprep.subr.bf16.mxu0 0
        %637 = vmatpush1.bf16.msra.mxu0 0
        %638 = vmatprep.subr.bf16.mxu0 0
        %639 = vmatpush1.bf16.msra.mxu0 0
        %640 = vmatprep.subr.bf16.mxu0 0
        %641 = vmatpush1.bf16.msra.mxu0 0
        %642 = vmatprep.subr.bf16.mxu0 0
        %643 = vmatpush1.bf16.msra.mxu0 0
        %644 = vmatprep.subr.bf16.mxu0 0
        %645 = vmatpush1.bf16.msra.mxu0 0
        %646 = vmatprep.subr.bf16.mxu0 0
        %647 = vmatpush1.bf16.msra.mxu0 0
        %648 = vmatprep.subr.bf16.mxu0 0
        %649 = vmatpush1.bf16.msra.mxu0 0
        %650 = vmatprep.subr.bf16.mxu0 0
        %651 = vmatpush1.bf16.msra.mxu0 0
        %652 = vmatprep.mubr.bf16.mxu0 0
        %653 = vmatmul.mubr.bf16.gmra.mrb[0].mxu0 %v387
        %v654 = vpop.f32.mrb[0].mxu0
        %v655 = vadd.f32 %v510, %v654
        %v656 = vpop.f32.mrb[0].mxu0
        %v657 = vpop.f32.mrb[0].mxu0
        %v658 = vadd.f32 %v513, %v657
        %v659 = vpop.f32.mrb[0].mxu0
        %660 = vmatprep.mubr.bf16.mxu0 0
        %661 = vmatmul.mubr.bf16.gmra.mrb[0].mxu0 %v388
        %v662 = vpop.f32.mrb[0].mxu0
        %v663 = vadd.f32 %v518, %v662
        %v664 = vpop.f32.mrb[0].mxu0
        %v665 = vpop.f32.mrb[0].mxu0
        %v666 = vadd.f32 %v521, %v665
        %v667 = vpop.f32.mrb[0].mxu0
        %668 = vmatprep.mubr.bf16.mxu0 0
        %669 = vmatmul.mubr.bf16.gmra.mrb[0].mxu0 %v389
        %v670 = vpop.f32.mrb[0].mxu0
        %v671 = vadd.f32 %v526, %v670
        %v672 = vpop.f32.mrb[0].mxu0
        %v673 = vpop.f32.mrb[0].mxu0
        %v674 = vadd.f32 %v529, %v673
        %v675 = vpop.f32.mrb[0].mxu0
        %676 = vmatprep.mubr.bf16.mxu0 0
        %677 = vmatmul.mubr.bf16.gmra.mrb[0].mxu0 %v390
        %v678 = vpop.f32.mrb[0].mxu0
        %v679 = vadd.f32 %v534, %v678
        %v680 = vpop.f32.mrb[0].mxu0
        %v681 = vpop.f32.mrb[0].mxu0
        %v682 = vadd.f32 %v537, %v681
        %v683 = vpop.f32.mrb[0].mxu0
        %684 = vmatprep.mubr.bf16.mxu0 0
        %685 = vmatmul.mubr.bf16.gmra.mrb[0].mxu0 %v391
        %v686 = vpop.f32.mrb[0].mxu0
        %v687 = vadd.f32 %v542, %v686
        %v688 = vpop.f32.mrb[0].mxu0
        %v689 = vpop.f32.mrb[0].mxu0
        %v690 = vadd.f32 %v545, %v689
        %v691 = vpop.f32.mrb[0].mxu0
        %692 = vmatprep.mubr.bf16.mxu0 0
        %693 = vmatmul.mubr.bf16.gmra.mrb[0].mxu0 %v392
        %v694 = vpop.f32.mrb[0].mxu0
        %v695 = vadd.f32 %v550, %v694
        %v696 = vpop.f32.mrb[0].mxu0
        %v697 = vpop.f32.mrb[0].mxu0
        %v698 = vadd.f32 %v553, %v697
        %v699 = vpop.f32.mrb[0].mxu0
        %700 = vmatprep.mubr.bf16.mxu0 0
        %701 = vmatmul.mubr.bf16.gmra.mrb[0].mxu0 %v393
        %v702 = vpop.f32.mrb[0].mxu0
        %v703 = vadd.f32 %v558, %v702
        %v704 = vpop.f32.mrb[0].mxu0
        %v705 = vpop.f32.mrb[0].mxu0
        %v706 = vadd.f32 %v561, %v705
        %v707 = vpop.f32.mrb[0].mxu0
        %708 = vmatprep.mubr.bf16.mxu0 0
        %709 = vmatmul.mubr.bf16.gmra.mrb[0].mxu0 %v394
        %v710 = vpop.f32.mrb[0].mxu0
        %v711 = vadd.f32 %v566, %v710
        %v712 = vpop.f32.mrb[0].mxu0
        %v713 = vpop.f32.mrb[0].mxu0
        %v714 = vadd.f32 %v569, %v713
        %v715 = vpop.f32.mrb[0].mxu0
        %716 = vdwg.mxu0
        %s717 = scalar_lea.vmem %s3, 32
        %v718 = vld [vmem:[%s717] sm:$0xff]
        %v719 = vld [vmem:[%s717 + $0x8] sm:$0xff]
        %v720 = vmul.f32 %v655, %v718
        %v721 = vmul.f32 %v658, %v719
        %v722 = vmul.f32 %v663, %v718
        %v723 = vmul.f32 %v666, %v719
        %v724 = vmul.f32 %v671, %v718
        %v725 = vmul.f32 %v674, %v719
        %v726 = vmul.f32 %v679, %v718
        %v727 = vmul.f32 %v682, %v719
        %v728 = vmul.f32 %v687, %v718
        %v729 = vmul.f32 %v690, %v719
        %v730 = vmul.f32 %v695, %v718
        %v731 = vmul.f32 %v698, %v719
        %v732 = vmul.f32 %v703, %v718
        %v733 = vmul.f32 %v706, %v719
        %v734 = vmul.f32 %v711, %v718
        %v735 = vmul.f32 %v714, %v719
        %v736 = vrot.slane %v655, 6
        %v737 = vrot.slane %v663, 6
        %v738 = vrot.slane %v671, 6
        %v739 = vrot.slane %v679, 6
        %v740 = vrot.slane %v687, 6
        %v741 = vrot.slane %v695, 6
        %v742 = vrot.slane %v703, 6
        %v743 = vrot.slane %v711, 6
        %v744 = vrot.slane %v658, 6
        %v745 = vrot.slane %v666, 6
        %v746 = vrot.slane %v674, 6
        %v747 = vrot.slane %v682, 6
        %v748 = vrot.slane %v690, 6
        %v749 = vrot.slane %v698, 6
        %v750 = vrot.slane %v706, 6
        %v751 = vrot.slane %v714, 6
        %v752 = vlaneseq
        %v753 = vshrl.u32 %v752, 7
        %vm754 = vcmp.lt.s32.totalorder %v753, 2
        %v755 = vsel %vm754, %v736, %v744
        %v756 = vsel %vm754, %v737, %v745
        %v757 = vsel %vm754, %v738, %v746
        %v758 = vsel %vm754, %v739, %v747
        %v759 = vsel %vm754, %v740, %v748
        %v760 = vsel %vm754, %v741, %v749
        %v761 = vsel %vm754, %v742, %v750
        %v762 = vsel %vm754, %v743, %v751
        %v763 = vsel %vm754, %v744, %v736
        %v764 = vsel %vm754, %v745, %v737
        %v765 = vsel %vm754, %v746, %v738
        %v766 = vsel %vm754, %v747, %v739
        %v767 = vsel %vm754, %v748, %v740
        %v768 = vsel %vm754, %v749, %v741
        %v769 = vsel %vm754, %v750, %v742
        %v770 = vsel %vm754, %v751, %v743
        %v771 = vld [vmem:[%s3] sm:$0xff]
        %v772 = vld [vmem:[%s3 + $0x8] sm:$0xff]
        %v773 = vmul.f32 %v763, %v771
        %v774 = vmul.f32 %v755, %v772
        %v775 = vmul.f32 %v764, %v771
        %v776 = vmul.f32 %v756, %v772
        %v777 = vmul.f32 %v765, %v771
        %v778 = vmul.f32 %v757, %v772
        %v779 = vmul.f32 %v766, %v771
        %v780 = vmul.f32 %v758, %v772
        %v781 = vmul.f32 %v767, %v771
        %v782 = vmul.f32 %v759, %v772
        %v783 = vmul.f32 %v768, %v771
        %v784 = vmul.f32 %v760, %v772
        %v785 = vmul.f32 %v769, %v771
        %v786 = vmul.f32 %v761, %v772
        %v787 = vmul.f32 %v770, %v771
        %v788 = vmul.f32 %v762, %v772
        %v789 = vadd.f32 %v720, %v773
        %v790 = vadd.f32 %v721, %v774
        %v791 = vadd.f32 %v722, %v775
        %v792 = vadd.f32 %v723, %v776
        %v793 = vadd.f32 %v724, %v777
        %v794 = vadd.f32 %v725, %v778
        %v795 = vadd.f32 %v726, %v779
        %v796 = vadd.f32 %v727, %v780
        %v797 = vadd.f32 %v728, %v781
        %v798 = vadd.f32 %v729, %v782
        %v799 = vadd.f32 %v730, %v783
        %v800 = vadd.f32 %v731, %v784
        %v801 = vadd.f32 %v732, %v785
        %v802 = vadd.f32 %v733, %v786
        %v803 = vadd.f32 %v734, %v787
        %v804 = vadd.f32 %v735, %v788
        %v805 = vrot.slane %v655, 7
        %v806 = vrot.slane %v663, 7
        %v807 = vrot.slane %v671, 7
        %v808 = vrot.slane %v679, 7
        %v809 = vrot.slane %v687, 7
        %v810 = vrot.slane %v695, 7
        %v811 = vrot.slane %v703, 7
        %v812 = vrot.slane %v711, 7
        %v813 = vrot.slane %v658, 7
        %v814 = vrot.slane %v666, 7
        %v815 = vrot.slane %v674, 7
        %v816 = vrot.slane %v682, 7
        %v817 = vrot.slane %v690, 7
        %v818 = vrot.slane %v698, 7
        %v819 = vrot.slane %v706, 7
        %v820 = vrot.slane %v714, 7
        %vm821 = vcmp.lt.s32.totalorder %v753, 1
        %v822 = vsel %vm821, %v805, %v813
        %v823 = vsel %vm821, %v806, %v814
        %v824 = vsel %vm821, %v807, %v815
        %v825 = vsel %vm821, %v808, %v816
        %v826 = vsel %vm821, %v809, %v817
        %v827 = vsel %vm821, %v810, %v818
        %v828 = vsel %vm821, %v811, %v819
        %v829 = vsel %vm821, %v812, %v820
        %v830 = vsel %vm821, %v813, %v805
        %v831 = vsel %vm821, %v814, %v806
        %v832 = vsel %vm821, %v815, %v807
        %v833 = vsel %vm821, %v816, %v808
        %v834 = vsel %vm821, %v817, %v809
        %v835 = vsel %vm821, %v818, %v810
        %v836 = vsel %vm821, %v819, %v811
        %v837 = vsel %vm821, %v820, %v812
        %s838 = scalar_lea.vmem %s3, 16
        %v839 = vld [vmem:[%s838] sm:$0xff]
        %v840 = vld [vmem:[%s838 + $0x8] sm:$0xff]
        %v841 = vmul.f32 %v830, %v839
        %v842 = vmul.f32 %v822, %v840
        %v843 = vmul.f32 %v831, %v839
        %v844 = vmul.f32 %v823, %v840
        %v845 = vmul.f32 %v832, %v839
        %v846 = vmul.f32 %v824, %v840
        %v847 = vmul.f32 %v833, %v839
        %v848 = vmul.f32 %v825, %v840
        %v849 = vmul.f32 %v834, %v839
        %v850 = vmul.f32 %v826, %v840
        %v851 = vmul.f32 %v835, %v839
        %v852 = vmul.f32 %v827, %v840
        %v853 = vmul.f32 %v836, %v839
        %v854 = vmul.f32 %v828, %v840
        %v855 = vmul.f32 %v837, %v839
        %v856 = vmul.f32 %v829, %v840
        %v857 = vadd.f32 %v789, %v841
        %v858 = vadd.f32 %v790, %v842
        %v859 = vadd.f32 %v791, %v843
        %v860 = vadd.f32 %v792, %v844
        %v861 = vadd.f32 %v793, %v845
        %v862 = vadd.f32 %v794, %v846
        %v863 = vadd.f32 %v795, %v847
        %v864 = vadd.f32 %v796, %v848
        %v865 = vadd.f32 %v797, %v849
        %v866 = vadd.f32 %v798, %v850
        %v867 = vadd.f32 %v799, %v851
        %v868 = vadd.f32 %v800, %v852
        %v869 = vadd.f32 %v801, %v853
        %v870 = vadd.f32 %v802, %v854
        %v871 = vadd.f32 %v803, %v855
        %v872 = vadd.f32 %v804, %v856
        %v873 = vrot.slane %v655, 1
        %v874 = vrot.slane %v663, 1
        %v875 = vrot.slane %v671, 1
        %v876 = vrot.slane %v679, 1
        %v877 = vrot.slane %v687, 1
        %v878 = vrot.slane %v695, 1
        %v879 = vrot.slane %v703, 1
        %v880 = vrot.slane %v711, 1
        %v881 = vrot.slane %v658, 1
        %v882 = vrot.slane %v666, 1
        %v883 = vrot.slane %v674, 1
        %v884 = vrot.slane %v682, 1
        %v885 = vrot.slane %v690, 1
        %v886 = vrot.slane %v698, 1
        %v887 = vrot.slane %v706, 1
        %v888 = vrot.slane %v714, 1
        %vm889 = vcmp.lt.s32.totalorder %v753, 7
        %v890 = vsel %vm889, %v873, %v881
        %v891 = vsel %vm889, %v874, %v882
        %v892 = vsel %vm889, %v875, %v883
        %v893 = vsel %vm889, %v876, %v884
        %v894 = vsel %vm889, %v877, %v885
        %v895 = vsel %vm889, %v878, %v886
        %v896 = vsel %vm889, %v879, %v887
        %v897 = vsel %vm889, %v880, %v888
        %v898 = vsel %vm889, %v881, %v873
        %v899 = vsel %vm889, %v882, %v874
        %v900 = vsel %vm889, %v883, %v875
        %v901 = vsel %vm889, %v884, %v876
        %v902 = vsel %vm889, %v885, %v877
        %v903 = vsel %vm889, %v886, %v878
        %v904 = vsel %vm889, %v887, %v879
        %v905 = vsel %vm889, %v888, %v880
        %s906 = scalar_lea.vmem %s3, 48
        %v907 = vld [vmem:[%s906] sm:$0xff]
        %v908 = vld [vmem:[%s906 + $0x8] sm:$0xff]
        %v909 = vmul.f32 %v890, %v907
        %v910 = vmul.f32 %v898, %v908
        %v911 = vmul.f32 %v891, %v907
        %v912 = vmul.f32 %v899, %v908
        %v913 = vmul.f32 %v892, %v907
        %v914 = vmul.f32 %v900, %v908
        %v915 = vmul.f32 %v893, %v907
        %v916 = vmul.f32 %v901, %v908
        %v917 = vmul.f32 %v894, %v907
        %v918 = vmul.f32 %v902, %v908
        %v919 = vmul.f32 %v895, %v907
        %v920 = vmul.f32 %v903, %v908
        %v921 = vmul.f32 %v896, %v907
        %v922 = vmul.f32 %v904, %v908
        %v923 = vmul.f32 %v897, %v907
        %v924 = vmul.f32 %v905, %v908
        %v925 = vadd.f32 %v857, %v909
        %v926 = vadd.f32 %v858, %v910
        %v927 = vadd.f32 %v859, %v911
        %v928 = vadd.f32 %v860, %v912
        %v929 = vadd.f32 %v861, %v913
        %v930 = vadd.f32 %v862, %v914
        %v931 = vadd.f32 %v863, %v915
        %v932 = vadd.f32 %v864, %v916
        %v933 = vadd.f32 %v865, %v917
        %v934 = vadd.f32 %v866, %v918
        %v935 = vadd.f32 %v867, %v919
        %v936 = vadd.f32 %v868, %v920
        %v937 = vadd.f32 %v869, %v921
        %v938 = vadd.f32 %v870, %v922
        %v939 = vadd.f32 %v871, %v923
        %v940 = vadd.f32 %v872, %v924
        %v941 = vrot.slane %v655, 2
        %v942 = vrot.slane %v663, 2
        %v943 = vrot.slane %v671, 2
        %v944 = vrot.slane %v679, 2
        %v945 = vrot.slane %v687, 2
        %v946 = vrot.slane %v695, 2
        %v947 = vrot.slane %v703, 2
        %v948 = vrot.slane %v711, 2
        %v949 = vrot.slane %v658, 2
        %v950 = vrot.slane %v666, 2
        %v951 = vrot.slane %v674, 2
        %v952 = vrot.slane %v682, 2
        %v953 = vrot.slane %v690, 2
        %v954 = vrot.slane %v698, 2
        %v955 = vrot.slane %v706, 2
        %v956 = vrot.slane %v714, 2
        %vm957 = vcmp.lt.s32.totalorder %v753, 6
        %v958 = vsel %vm957, %v941, %v949
        %v959 = vsel %vm957, %v942, %v950
        %v960 = vsel %vm957, %v943, %v951
        %v961 = vsel %vm957, %v944, %v952
        %v962 = vsel %vm957, %v945, %v953
        %v963 = vsel %vm957, %v946, %v954
        %v964 = vsel %vm957, %v947, %v955
        %v965 = vsel %vm957, %v948, %v956
        %v966 = vsel %vm957, %v949, %v941
        %v967 = vsel %vm957, %v950, %v942
        %v968 = vsel %vm957, %v951, %v943
        %v969 = vsel %vm957, %v952, %v944
        %v970 = vsel %vm957, %v953, %v945
        %v971 = vsel %vm957, %v954, %v946
        %v972 = vsel %vm957, %v955, %v947
        %v973 = vsel %vm957, %v956, %v948
        %s974 = scalar_lea.vmem %s3, 64
        %v975 = vld [vmem:[%s974] sm:$0xff]
        %v976 = vld [vmem:[%s974 + $0x8] sm:$0xff]
        %v977 = vmul.f32 %v958, %v975
        %v978 = vmul.f32 %v966, %v976
        %v979 = vmul.f32 %v959, %v975
        %v980 = vmul.f32 %v967, %v976
        %v981 = vmul.f32 %v960, %v975
        %v982 = vmul.f32 %v968, %v976
        %v983 = vmul.f32 %v961, %v975
        %v984 = vmul.f32 %v969, %v976
        %v985 = vmul.f32 %v962, %v975
        %v986 = vmul.f32 %v970, %v976
        %v987 = vmul.f32 %v963, %v975
        %v988 = vmul.f32 %v971, %v976
        %v989 = vmul.f32 %v964, %v975
        %v990 = vmul.f32 %v972, %v976
        %v991 = vmul.f32 %v965, %v975
        %v992 = vmul.f32 %v973, %v976
        %v993 = vadd.f32 %v925, %v977
        %v994 = vadd.f32 %v926, %v978
        %v995 = vadd.f32 %v927, %v979
        %v996 = vadd.f32 %v928, %v980
        %v997 = vadd.f32 %v929, %v981
        %v998 = vadd.f32 %v930, %v982
        %v999 = vadd.f32 %v931, %v983
        %v1000 = vadd.f32 %v932, %v984
        %v1001 = vadd.f32 %v933, %v985
        %v1002 = vadd.f32 %v934, %v986
        %v1003 = vadd.f32 %v935, %v987
        %v1004 = vadd.f32 %v936, %v988
        %v1005 = vadd.f32 %v937, %v989
        %v1006 = vadd.f32 %v938, %v990
        %v1007 = vadd.f32 %v939, %v991
        %v1008 = vadd.f32 %v940, %v992
        %v1009 = vld [vmem:[%s4] sm:$0xff]
        %v1010 = vld [vmem:[%s4 + $0x8] sm:$0xff]
        %v1011 = vld [vmem:[%s4 + $0x10] sm:$0xff]
        %v1012 = vld [vmem:[%s4 + $0x18] sm:$0xff]
        %v1013 = vld [vmem:[%s4 + $0x20] sm:$0xff]
        %v1014 = vld [vmem:[%s4 + $0x28] sm:$0xff]
        %v1015 = vld [vmem:[%s4 + $0x30] sm:$0xff]
        %v1016 = vld [vmem:[%s4 + $0x38] sm:$0xff]
        %vm1017 = vcmask 523264
        %v1019 = vsel %vm1017, %v993, 0
        %v1022 = vsel %vm1017, %v994, 0
        %v1025 = vsel %vm1017, %v995, 0
        %v1028 = vsel %vm1017, %v996, 0
        %v1031 = vsel %vm1017, %v997, 0
        %v1034 = vsel %vm1017, %v998, 0
        %v1037 = vsel %vm1017, %v999, 0
        %v1040 = vsel %vm1017, %v1000, 0
        %v1043 = vsel %vm1017, %v1001, 0
        %v1046 = vsel %vm1017, %v1002, 0
        %v1049 = vsel %vm1017, %v1003, 0
        %v1052 = vsel %vm1017, %v1004, 0
        %v1055 = vsel %vm1017, %v1005, 0
        %v1058 = vsel %vm1017, %v1006, 0
        %v1061 = vsel %vm1017, %v1007, 0
        %v1064 = vsel %vm1017, %v1008, 0
        %1066 = vmatprep.subr.mxu0 0.0
        %v1067 = vand.u32 %v1009, 4294901760
        %1068 = vmatpush1.msra.mxu0 %v1067
        %1069 = vmatprep.subr.mxu0 0.0
        %v1070 = vand.u32 %v1010, 4294901760
        %1071 = vmatpush1.msra.mxu0 %v1070
        %1072 = vmatprep.subr.mxu0 0.0
        %v1073 = vand.u32 %v1011, 4294901760
        %1074 = vmatpush1.msra.mxu0 %v1073
        %1075 = vmatprep.subr.mxu0 0.0
        %v1076 = vand.u32 %v1012, 4294901760
        %1077 = vmatpush1.msra.mxu0 %v1076
        %1078 = vmatprep.subr.mxu0 0.0
        %v1079 = vand.u32 %v1013, 4294901760
        %1080 = vmatpush1.msra.mxu0 %v1079
        %1081 = vmatprep.subr.mxu0 0.0
        %v1082 = vand.u32 %v1014, 4294901760
        %1083 = vmatpush1.msra.mxu0 %v1082
        %1084 = vmatprep.subr.mxu0 0.0
        %v1085 = vand.u32 %v1015, 4294901760
        %1086 = vmatpush1.msra.mxu0 %v1085
        %1087 = vmatprep.subr.mxu0 0.0
        %v1088 = vand.u32 %v1016, 4294901760
        %1089 = vmatpush1.msra.mxu0 %v1088
        %1090 = vmatprep.subr.mxu0 0.0
        %1091 = vmatpush1.msra.mxu0 0.0
        %1092 = vmatprep.subr.mxu0 0.0
        %1093 = vmatpush1.msra.mxu0 0.0
        %1094 = vmatprep.subr.mxu0 0.0
        %1095 = vmatpush1.msra.mxu0 0.0
        %1096 = vmatprep.subr.mxu0 0.0
        %1097 = vmatpush1.msra.mxu0 0.0
        %1098 = vmatprep.subr.mxu0 0.0
        %1099 = vmatpush1.msra.mxu0 0.0
        %1100 = vmatprep.subr.mxu0 0.0
        %1101 = vmatpush1.msra.mxu0 0.0
        %1102 = vmatprep.subr.mxu0 0.0
        %1103 = vmatpush1.msra.mxu0 0.0
        %1104 = vmatprep.subr.mxu0 0.0
        %1105 = vmatpush1.msra.mxu0 0.0
        %1106 = vmatprep.subr.mxu0 0.0
        %1107 = vmatpush1.msra.mxu0 0.0
        %1108 = vmatprep.subr.mxu0 0.0
        %1109 = vmatpush1.msra.mxu0 0.0
        %1110 = vmatprep.subr.mxu0 0.0
        %1111 = vmatpush1.msra.mxu0 0.0
        %1112 = vmatprep.subr.mxu0 0.0
        %1113 = vmatpush1.msra.mxu0 0.0
        %1114 = vmatprep.subr.mxu0 0.0
        %1115 = vmatpush1.msra.mxu0 0.0
        %1116 = vmatprep.subr.mxu0 0.0
        %1117 = vmatpush1.msra.mxu0 0.0
        %1118 = vmatprep.subr.mxu0 0.0
        %1119 = vmatpush1.msra.mxu0 0.0
        %1120 = vmatprep.subr.mxu0 0.0
        %1121 = vmatpush1.msra.mxu0 0.0
        %1122 = vmatprep.subr.mxu0 0.0
        %1123 = vmatpush1.msra.mxu0 0.0
        %1124 = vmatprep.subr.mxu0 0.0
        %1125 = vmatpush1.msra.mxu0 0.0
        %1126 = vmatprep.subr.mxu0 0.0
        %1127 = vmatpush1.msra.mxu0 0.0
        %1128 = vmatprep.subr.mxu0 0.0
        %1129 = vmatpush1.msra.mxu0 0.0
        %1130 = vmatprep.subr.mxu0 0.0
        %1131 = vmatpush1.msra.mxu0 0.0
        %1132 = vmatprep.subr.mxu0 0.0
        %1133 = vmatpush1.msra.mxu0 0.0
        %1134 = vmatprep.subr.mxu0 0.0
        %1135 = vmatpush1.msra.mxu0 0.0
        %1136 = vmatprep.subr.mxu0 0.0
        %1137 = vmatpush1.msra.mxu0 0.0
        %1138 = vmatprep.mubr.f32.mxu0 0.0
        %v1139 = vand.u32 %v1019, 4294901760
        %v1140 = vsub.f32 %v1019, %v1139
        %v1141 = vand.u32 %v1140, 4294901760
        %v1142 = vsub.f32 %v1140, %v1141
        %v1143 = vand.u32 %v1142, 4294901760
        %1144 = vmatmul.mubr.f32.gmra.mrb[0].mxu0 %v1143
        %v1145 = vpop.f32.mrb[0].mxu0
        %v1146 = vadd.f32 0.0, %v1145
        %v1147 = vpop.f32.mrb[0].mxu0
        %1148 = vmatprep.mubr.f32.mxu0 0.0
        %v1149 = vand.u32 %v1022, 4294901760
        %v1150 = vsub.f32 %v1022, %v1149
        %v1151 = vand.u32 %v1150, 4294901760
        %v1152 = vsub.f32 %v1150, %v1151
        %v1153 = vand.u32 %v1152, 4294901760
        %1154 = vmatmul.mubr.f32.gmra.mrb[0].mxu0 %v1153
        %v1155 = vpop.f32.mrb[0].mxu0
        %v1156 = vadd.f32 0.0, %v1155
        %v1157 = vpop.f32.mrb[0].mxu0
        %1158 = vmatprep.mubr.f32.mxu0 0.0
        %v1159 = vand.u32 %v1025, 4294901760
        %v1160 = vsub.f32 %v1025, %v1159
        %v1161 = vand.u32 %v1160, 4294901760
        %v1162 = vsub.f32 %v1160, %v1161
        %v1163 = vand.u32 %v1162, 4294901760
        %1164 = vmatmul.mubr.f32.gmra.mrb[0].mxu0 %v1163
        %v1165 = vpop.f32.mrb[0].mxu0
        %v1166 = vadd.f32 0.0, %v1165
        %v1167 = vpop.f32.mrb[0].mxu0
        %1168 = vmatprep.mubr.f32.mxu0 0.0
        %v1169 = vand.u32 %v1028, 4294901760
        %v1170 = vsub.f32 %v1028, %v1169
        %v1171 = vand.u32 %v1170, 4294901760
        %v1172 = vsub.f32 %v1170, %v1171
        %v1173 = vand.u32 %v1172, 4294901760
        %1174 = vmatmul.mubr.f32.gmra.mrb[0].mxu0 %v1173
        %v1175 = vpop.f32.mrb[0].mxu0
        %v1176 = vadd.f32 0.0, %v1175
        %v1177 = vpop.f32.mrb[0].mxu0
        %1178 = vmatprep.mubr.f32.mxu0 0.0
        %v1179 = vand.u32 %v1031, 4294901760
        %v1180 = vsub.f32 %v1031, %v1179
        %v1181 = vand.u32 %v1180, 4294901760
        %v1182 = vsub.f32 %v1180, %v1181
        %v1183 = vand.u32 %v1182, 4294901760
        %1184 = vmatmul.mubr.f32.gmra.mrb[0].mxu0 %v1183
        %v1185 = vpop.f32.mrb[0].mxu0
        %v1186 = vadd.f32 0.0, %v1185
        %v1187 = vpop.f32.mrb[0].mxu0
        %1188 = vmatprep.mubr.f32.mxu0 0.0
        %v1189 = vand.u32 %v1034, 4294901760
        %v1190 = vsub.f32 %v1034, %v1189
        %v1191 = vand.u32 %v1190, 4294901760
        %v1192 = vsub.f32 %v1190, %v1191
        %v1193 = vand.u32 %v1192, 4294901760
        %1194 = vmatmul.mubr.f32.gmra.mrb[0].mxu0 %v1193
        %v1195 = vpop.f32.mrb[0].mxu0
        %v1196 = vadd.f32 0.0, %v1195
        %v1197 = vpop.f32.mrb[0].mxu0
        %1198 = vmatprep.mubr.f32.mxu0 0.0
        %v1199 = vand.u32 %v1037, 4294901760
        %v1200 = vsub.f32 %v1037, %v1199
        %v1201 = vand.u32 %v1200, 4294901760
        %v1202 = vsub.f32 %v1200, %v1201
        %v1203 = vand.u32 %v1202, 4294901760
        %1204 = vmatmul.mubr.f32.gmra.mrb[0].mxu0 %v1203
        %v1205 = vpop.f32.mrb[0].mxu0
        %v1206 = vadd.f32 0.0, %v1205
        %v1207 = vpop.f32.mrb[0].mxu0
        %1208 = vmatprep.mubr.f32.mxu0 0.0
        %v1209 = vand.u32 %v1040, 4294901760
        %v1210 = vsub.f32 %v1040, %v1209
        %v1211 = vand.u32 %v1210, 4294901760
        %v1212 = vsub.f32 %v1210, %v1211
        %v1213 = vand.u32 %v1212, 4294901760
        %1214 = vmatmul.mubr.f32.gmra.mrb[0].mxu0 %v1213
        %v1215 = vpop.f32.mrb[0].mxu0
        %v1216 = vadd.f32 0.0, %v1215
        %v1217 = vpop.f32.mrb[0].mxu0
        %1218 = vmatprep.mubr.f32.mxu0 0.0
        %v1219 = vand.u32 %v1043, 4294901760
        %v1220 = vsub.f32 %v1043, %v1219
        %v1221 = vand.u32 %v1220, 4294901760
        %v1222 = vsub.f32 %v1220, %v1221
        %v1223 = vand.u32 %v1222, 4294901760
        %1224 = vmatmul.mubr.f32.gmra.mrb[0].mxu0 %v1223
        %v1225 = vpop.f32.mrb[0].mxu0
        %v1226 = vadd.f32 0.0, %v1225
        %v1227 = vpop.f32.mrb[0].mxu0
        %1228 = vmatprep.mubr.f32.mxu0 0.0
        %v1229 = vand.u32 %v1046, 4294901760
        %v1230 = vsub.f32 %v1046, %v1229
        %v1231 = vand.u32 %v1230, 4294901760
        %v1232 = vsub.f32 %v1230, %v1231
        %v1233 = vand.u32 %v1232, 4294901760
        %1234 = vmatmul.mubr.f32.gmra.mrb[0].mxu0 %v1233
        %v1235 = vpop.f32.mrb[0].mxu0
        %v1236 = vadd.f32 0.0, %v1235
        %v1237 = vpop.f32.mrb[0].mxu0
        %1238 = vmatprep.mubr.f32.mxu0 0.0
        %v1239 = vand.u32 %v1049, 4294901760
        %v1240 = vsub.f32 %v1049, %v1239
        %v1241 = vand.u32 %v1240, 4294901760
        %v1242 = vsub.f32 %v1240, %v1241
        %v1243 = vand.u32 %v1242, 4294901760
        %1244 = vmatmul.mubr.f32.gmra.mrb[0].mxu0 %v1243
        %v1245 = vpop.f32.mrb[0].mxu0
        %v1246 = vadd.f32 0.0, %v1245
        %v1247 = vpop.f32.mrb[0].mxu0
        %1248 = vmatprep.mubr.f32.mxu0 0.0
        %v1249 = vand.u32 %v1052, 4294901760
        %v1250 = vsub.f32 %v1052, %v1249
        %v1251 = vand.u32 %v1250, 4294901760
        %v1252 = vsub.f32 %v1250, %v1251
        %v1253 = vand.u32 %v1252, 4294901760
        %1254 = vmatmul.mubr.f32.gmra.mrb[0].mxu0 %v1253
        %v1255 = vpop.f32.mrb[0].mxu0
        %v1256 = vadd.f32 0.0, %v1255
        %v1257 = vpop.f32.mrb[0].mxu0
        %1258 = vmatprep.mubr.f32.mxu0 0.0
        %v1259 = vand.u32 %v1055, 4294901760
        %v1260 = vsub.f32 %v1055, %v1259
        %v1261 = vand.u32 %v1260, 4294901760
        %v1262 = vsub.f32 %v1260, %v1261
        %v1263 = vand.u32 %v1262, 4294901760
        %1264 = vmatmul.mubr.f32.gmra.mrb[0].mxu0 %v1263
        %v1265 = vpop.f32.mrb[0].mxu0
        %v1266 = vadd.f32 0.0, %v1265
        %v1267 = vpop.f32.mrb[0].mxu0
        %1268 = vmatprep.mubr.f32.mxu0 0.0
        %v1269 = vand.u32 %v1058, 4294901760
        %v1270 = vsub.f32 %v1058, %v1269
        %v1271 = vand.u32 %v1270, 4294901760
        %v1272 = vsub.f32 %v1270, %v1271
        %v1273 = vand.u32 %v1272, 4294901760
        %1274 = vmatmul.mubr.f32.gmra.mrb[0].mxu0 %v1273
        %v1275 = vpop.f32.mrb[0].mxu0
        %v1276 = vadd.f32 0.0, %v1275
        %v1277 = vpop.f32.mrb[0].mxu0
        %1278 = vmatprep.mubr.f32.mxu0 0.0
        %v1279 = vand.u32 %v1061, 4294901760
        %v1280 = vsub.f32 %v1061, %v1279
        %v1281 = vand.u32 %v1280, 4294901760
        %v1282 = vsub.f32 %v1280, %v1281
        %v1283 = vand.u32 %v1282, 4294901760
        %1284 = vmatmul.mubr.f32.gmra.mrb[0].mxu0 %v1283
        %v1285 = vpop.f32.mrb[0].mxu0
        %v1286 = vadd.f32 0.0, %v1285
        %v1287 = vpop.f32.mrb[0].mxu0
        %1288 = vmatprep.mubr.f32.mxu0 0.0
        %v1289 = vand.u32 %v1064, 4294901760
        %v1290 = vsub.f32 %v1064, %v1289
        %v1291 = vand.u32 %v1290, 4294901760
        %v1292 = vsub.f32 %v1290, %v1291
        %v1293 = vand.u32 %v1292, 4294901760
        %1294 = vmatmul.mubr.f32.gmra.mrb[0].mxu0 %v1293
        %v1295 = vpop.f32.mrb[0].mxu0
        %v1296 = vadd.f32 0.0, %v1295
        %v1297 = vpop.f32.mrb[0].mxu0
        %1298 = vdwg.mxu0
        %1299 = vmatprep.subr.mxu0 0.0
        %v1300 = vand.u32 %v1009, 4294901760
        %v1301 = vsub.f32 %v1009, %v1300
        %v1302 = vand.u32 %v1301, 4294901760
        %v1303 = vsub.f32 %v1301, %v1302
        %v1304 = vand.u32 %v1303, 4294901760
        %1305 = vmatpush1.msra.mxu0 %v1304
        %1306 = vmatprep.subr.mxu0 0.0
        %v1307 = vand.u32 %v1010, 4294901760
        %v1308 = vsub.f32 %v1010, %v1307
        %v1309 = vand.u32 %v1308, 4294901760
        %v1310 = vsub.f32 %v1308, %v1309
        %v1311 = vand.u32 %v1310, 4294901760
        %1312 = vmatpush1.msra.mxu0 %v1311
        %1313 = vmatprep.subr.mxu0 0.0
        %v1314 = vand.u32 %v1011, 4294901760
        %v1315 = vsub.f32 %v1011, %v1314
        %v1316 = vand.u32 %v1315, 4294901760
        %v1317 = vsub.f32 %v1315, %v1316
        %v1318 = vand.u32 %v1317, 4294901760
        %1319 = vmatpush1.msra.mxu0 %v1318
        %1320 = vmatprep.subr.mxu0 0.0
        %v1321 = vand.u32 %v1012, 4294901760
        %v1322 = vsub.f32 %v1012, %v1321
        %v1323 = vand.u32 %v1322, 4294901760
        %v1324 = vsub.f32 %v1322, %v1323
        %v1325 = vand.u32 %v1324, 4294901760
        %1326 = vmatpush1.msra.mxu0 %v1325
        %1327 = vmatprep.subr.mxu0 0.0
        %v1328 = vand.u32 %v1013, 4294901760
        %v1329 = vsub.f32 %v1013, %v1328
        %v1330 = vand.u32 %v1329, 4294901760
        %v1331 = vsub.f32 %v1329, %v1330
        %v1332 = vand.u32 %v1331, 4294901760
        %1333 = vmatpush1.msra.mxu0 %v1332
        %1334 = vmatprep.subr.mxu0 0.0
        %v1335 = vand.u32 %v1014, 4294901760
        %v1336 = vsub.f32 %v1014, %v1335
        %v1337 = vand.u32 %v1336, 4294901760
        %v1338 = vsub.f32 %v1336, %v1337
        %v1339 = vand.u32 %v1338, 4294901760
        %1340 = vmatpush1.msra.mxu0 %v1339
        %1341 = vmatprep.subr.mxu0 0.0
        %v1342 = vand.u32 %v1015, 4294901760
        %v1343 = vsub.f32 %v1015, %v1342
        %v1344 = vand.u32 %v1343, 4294901760
        %v1345 = vsub.f32 %v1343, %v1344
        %v1346 = vand.u32 %v1345, 4294901760
        %1347 = vmatpush1.msra.mxu0 %v1346
        %1348 = vmatprep.subr.mxu0 0.0
        %v1349 = vand.u32 %v1016, 4294901760
        %v1350 = vsub.f32 %v1016, %v1349
        %v1351 = vand.u32 %v1350, 4294901760
        %v1352 = vsub.f32 %v1350, %v1351
        %v1353 = vand.u32 %v1352, 4294901760
        %1354 = vmatpush1.msra.mxu0 %v1353
        %1355 = vmatprep.subr.mxu0 0.0
        %1356 = vmatpush1.msra.mxu0 0.0
        %1357 = vmatprep.subr.mxu0 0.0
        %1358 = vmatpush1.msra.mxu0 0.0
        %1359 = vmatprep.subr.mxu0 0.0
        %1360 = vmatpush1.msra.mxu0 0.0
        %1361 = vmatprep.subr.mxu0 0.0
        %1362 = vmatpush1.msra.mxu0 0.0
        %1363 = vmatprep.subr.mxu0 0.0
        %1364 = vmatpush1.msra.mxu0 0.0
        %1365 = vmatprep.subr.mxu0 0.0
        %1366 = vmatpush1.msra.mxu0 0.0
        %1367 = vmatprep.subr.mxu0 0.0
        %1368 = vmatpush1.msra.mxu0 0.0
        %1369 = vmatprep.subr.mxu0 0.0
        %1370 = vmatpush1.msra.mxu0 0.0
        %1371 = vmatprep.subr.mxu0 0.0
        %1372 = vmatpush1.msra.mxu0 0.0
        %1373 = vmatprep.subr.mxu0 0.0
        %1374 = vmatpush1.msra.mxu0 0.0
        %1375 = vmatprep.subr.mxu0 0.0
        %1376 = vmatpush1.msra.mxu0 0.0
        %1377 = vmatprep.subr.mxu0 0.0
        %1378 = vmatpush1.msra.mxu0 0.0
        %1379 = vmatprep.subr.mxu0 0.0
        %1380 = vmatpush1.msra.mxu0 0.0
        %1381 = vmatprep.subr.mxu0 0.0
        %1382 = vmatpush1.msra.mxu0 0.0
        %1383 = vmatprep.subr.mxu0 0.0
        %1384 = vmatpush1.msra.mxu0 0.0
        %1385 = vmatprep.subr.mxu0 0.0
        %1386 = vmatpush1.msra.mxu0 0.0
        %1387 = vmatprep.subr.mxu0 0.0
        %1388 = vmatpush1.msra.mxu0 0.0
        %1389 = vmatprep.subr.mxu0 0.0
        %1390 = vmatpush1.msra.mxu0 0.0
        %1391 = vmatprep.subr.mxu0 0.0
        %1392 = vmatpush1.msra.mxu0 0.0
        %1393 = vmatprep.subr.mxu0 0.0
        %1394 = vmatpush1.msra.mxu0 0.0
        %1395 = vmatprep.subr.mxu0 0.0
        %1396 = vmatpush1.msra.mxu0 0.0
        %1397 = vmatprep.subr.mxu0 0.0
        %1398 = vmatpush1.msra.mxu0 0.0
        %1399 = vmatprep.subr.mxu0 0.0
        %1400 = vmatpush1.msra.mxu0 0.0
        %1401 = vmatprep.subr.mxu0 0.0
        %1402 = vmatpush1.msra.mxu0 0.0
        %1403 = vmatprep.mubr.f32.mxu0 0.0
        %v1404 = vand.u32 %v1019, 4294901760
        %1405 = vmatmul.mubr.f32.gmra.mrb[0].mxu0 %v1404
        %v1406 = vpop.f32.mrb[0].mxu0
        %v1407 = vadd.f32 %v1146, %v1406
        %v1408 = vpop.f32.mrb[0].mxu0
        %1409 = vmatprep.mubr.f32.mxu0 0.0
        %v1410 = vand.u32 %v1022, 4294901760
        %1411 = vmatmul.mubr.f32.gmra.mrb[0].mxu0 %v1410
        %v1412 = vpop.f32.mrb[0].mxu0
        %v1413 = vadd.f32 %v1156, %v1412
        %v1414 = vpop.f32.mrb[0].mxu0
        %1415 = vmatprep.mubr.f32.mxu0 0.0
        %v1416 = vand.u32 %v1025, 4294901760
        %1417 = vmatmul.mubr.f32.gmra.mrb[0].mxu0 %v1416
        %v1418 = vpop.f32.mrb[0].mxu0
        %v1419 = vadd.f32 %v1166, %v1418
        %v1420 = vpop.f32.mrb[0].mxu0
        %1421 = vmatprep.mubr.f32.mxu0 0.0
        %v1422 = vand.u32 %v1028, 4294901760
        %1423 = vmatmul.mubr.f32.gmra.mrb[0].mxu0 %v1422
        %v1424 = vpop.f32.mrb[0].mxu0
        %v1425 = vadd.f32 %v1176, %v1424
        %v1426 = vpop.f32.mrb[0].mxu0
        %1427 = vmatprep.mubr.f32.mxu0 0.0
        %v1428 = vand.u32 %v1031, 4294901760
        %1429 = vmatmul.mubr.f32.gmra.mrb[0].mxu0 %v1428
        %v1430 = vpop.f32.mrb[0].mxu0
        %v1431 = vadd.f32 %v1186, %v1430
        %v1432 = vpop.f32.mrb[0].mxu0
        %1433 = vmatprep.mubr.f32.mxu0 0.0
        %v1434 = vand.u32 %v1034, 4294901760
        %1435 = vmatmul.mubr.f32.gmra.mrb[0].mxu0 %v1434
        %v1436 = vpop.f32.mrb[0].mxu0
        %v1437 = vadd.f32 %v1196, %v1436
        %v1438 = vpop.f32.mrb[0].mxu0
        %1439 = vmatprep.mubr.f32.mxu0 0.0
        %v1440 = vand.u32 %v1037, 4294901760
        %1441 = vmatmul.mubr.f32.gmra.mrb[0].mxu0 %v1440
        %v1442 = vpop.f32.mrb[0].mxu0
        %v1443 = vadd.f32 %v1206, %v1442
        %v1444 = vpop.f32.mrb[0].mxu0
        %1445 = vmatprep.mubr.f32.mxu0 0.0
        %v1446 = vand.u32 %v1040, 4294901760
        %1447 = vmatmul.mubr.f32.gmra.mrb[0].mxu0 %v1446
        %v1448 = vpop.f32.mrb[0].mxu0
        %v1449 = vadd.f32 %v1216, %v1448
        %v1450 = vpop.f32.mrb[0].mxu0
        %1451 = vmatprep.mubr.f32.mxu0 0.0
        %v1452 = vand.u32 %v1043, 4294901760
        %1453 = vmatmul.mubr.f32.gmra.mrb[0].mxu0 %v1452
        %v1454 = vpop.f32.mrb[0].mxu0
        %v1455 = vadd.f32 %v1226, %v1454
        %v1456 = vpop.f32.mrb[0].mxu0
        %1457 = vmatprep.mubr.f32.mxu0 0.0
        %v1458 = vand.u32 %v1046, 4294901760
        %1459 = vmatmul.mubr.f32.gmra.mrb[0].mxu0 %v1458
        %v1460 = vpop.f32.mrb[0].mxu0
        %v1461 = vadd.f32 %v1236, %v1460
        %v1462 = vpop.f32.mrb[0].mxu0
        %1463 = vmatprep.mubr.f32.mxu0 0.0
        %v1464 = vand.u32 %v1049, 4294901760
        %1465 = vmatmul.mubr.f32.gmra.mrb[0].mxu0 %v1464
        %v1466 = vpop.f32.mrb[0].mxu0
        %v1467 = vadd.f32 %v1246, %v1466
        %v1468 = vpop.f32.mrb[0].mxu0
        %1469 = vmatprep.mubr.f32.mxu0 0.0
        %v1470 = vand.u32 %v1052, 4294901760
        %1471 = vmatmul.mubr.f32.gmra.mrb[0].mxu0 %v1470
        %v1472 = vpop.f32.mrb[0].mxu0
        %v1473 = vadd.f32 %v1256, %v1472
        %v1474 = vpop.f32.mrb[0].mxu0
        %1475 = vmatprep.mubr.f32.mxu0 0.0
        %v1476 = vand.u32 %v1055, 4294901760
        %1477 = vmatmul.mubr.f32.gmra.mrb[0].mxu0 %v1476
        %v1478 = vpop.f32.mrb[0].mxu0
        %v1479 = vadd.f32 %v1266, %v1478
        %v1480 = vpop.f32.mrb[0].mxu0
        %1481 = vmatprep.mubr.f32.mxu0 0.0
        %v1482 = vand.u32 %v1058, 4294901760
        %1483 = vmatmul.mubr.f32.gmra.mrb[0].mxu0 %v1482
        %v1484 = vpop.f32.mrb[0].mxu0
        %v1485 = vadd.f32 %v1276, %v1484
        %v1486 = vpop.f32.mrb[0].mxu0
        %1487 = vmatprep.mubr.f32.mxu0 0.0
        %v1488 = vand.u32 %v1061, 4294901760
        %1489 = vmatmul.mubr.f32.gmra.mrb[0].mxu0 %v1488
        %v1490 = vpop.f32.mrb[0].mxu0
        %v1491 = vadd.f32 %v1286, %v1490
        %v1492 = vpop.f32.mrb[0].mxu0
        %1493 = vmatprep.mubr.f32.mxu0 0.0
        %v1494 = vand.u32 %v1064, 4294901760
        %1495 = vmatmul.mubr.f32.gmra.mrb[0].mxu0 %v1494
        %v1496 = vpop.f32.mrb[0].mxu0
        %v1497 = vadd.f32 %v1296, %v1496
        %v1498 = vpop.f32.mrb[0].mxu0
        %1499 = vdwg.mxu0
        %1500 = vmatprep.subr.mxu0 0.0
        %v1501 = vand.u32 %v1009, 4294901760
        %v1502 = vsub.f32 %v1009, %v1501
        %1503 = vmatpush1.msra.mxu0 %v1502
        %1504 = vmatprep.subr.mxu0 0.0
        %v1505 = vand.u32 %v1010, 4294901760
        %v1506 = vsub.f32 %v1010, %v1505
        %1507 = vmatpush1.msra.mxu0 %v1506
        %1508 = vmatprep.subr.mxu0 0.0
        %v1509 = vand.u32 %v1011, 4294901760
        %v1510 = vsub.f32 %v1011, %v1509
        %1511 = vmatpush1.msra.mxu0 %v1510
        %1512 = vmatprep.subr.mxu0 0.0
        %v1513 = vand.u32 %v1012, 4294901760
        %v1514 = vsub.f32 %v1012, %v1513
        %1515 = vmatpush1.msra.mxu0 %v1514
        %1516 = vmatprep.subr.mxu0 0.0
        %v1517 = vand.u32 %v1013, 4294901760
        %v1518 = vsub.f32 %v1013, %v1517
        %1519 = vmatpush1.msra.mxu0 %v1518
        %1520 = vmatprep.subr.mxu0 0.0
        %v1521 = vand.u32 %v1014, 4294901760
        %v1522 = vsub.f32 %v1014, %v1521
        %1523 = vmatpush1.msra.mxu0 %v1522
        %1524 = vmatprep.subr.mxu0 0.0
        %v1525 = vand.u32 %v1015, 4294901760
        %v1526 = vsub.f32 %v1015, %v1525
        %1527 = vmatpush1.msra.mxu0 %v1526
        %1528 = vmatprep.subr.mxu0 0.0
        %v1529 = vand.u32 %v1016, 4294901760
        %v1530 = vsub.f32 %v1016, %v1529
        %1531 = vmatpush1.msra.mxu0 %v1530
        %1532 = vmatprep.subr.mxu0 0.0
        %1533 = vmatpush1.msra.mxu0 0.0
        %1534 = vmatprep.subr.mxu0 0.0
        %1535 = vmatpush1.msra.mxu0 0.0
        %1536 = vmatprep.subr.mxu0 0.0
        %1537 = vmatpush1.msra.mxu0 0.0
        %1538 = vmatprep.subr.mxu0 0.0
        %1539 = vmatpush1.msra.mxu0 0.0
        %1540 = vmatprep.subr.mxu0 0.0
        %1541 = vmatpush1.msra.mxu0 0.0
        %1542 = vmatprep.subr.mxu0 0.0
        %1543 = vmatpush1.msra.mxu0 0.0
        %1544 = vmatprep.subr.mxu0 0.0
        %1545 = vmatpush1.msra.mxu0 0.0
        %1546 = vmatprep.subr.mxu0 0.0
        %1547 = vmatpush1.msra.mxu0 0.0
        %1548 = vmatprep.subr.mxu0 0.0
        %1549 = vmatpush1.msra.mxu0 0.0
        %1550 = vmatprep.subr.mxu0 0.0
        %1551 = vmatpush1.msra.mxu0 0.0
        %1552 = vmatprep.subr.mxu0 0.0
        %1553 = vmatpush1.msra.mxu0 0.0
        %1554 = vmatprep.subr.mxu0 0.0
        %1555 = vmatpush1.msra.mxu0 0.0
        %1556 = vmatprep.subr.mxu0 0.0
        %1557 = vmatpush1.msra.mxu0 0.0
        %1558 = vmatprep.subr.mxu0 0.0
        %1559 = vmatpush1.msra.mxu0 0.0
        %1560 = vmatprep.subr.mxu0 0.0
        %1561 = vmatpush1.msra.mxu0 0.0
        %1562 = vmatprep.subr.mxu0 0.0
        %1563 = vmatpush1.msra.mxu0 0.0
        %1564 = vmatprep.subr.mxu0 0.0
        %1565 = vmatpush1.msra.mxu0 0.0
        %1566 = vmatprep.subr.mxu0 0.0
        %1567 = vmatpush1.msra.mxu0 0.0
        %1568 = vmatprep.subr.mxu0 0.0
        %1569 = vmatpush1.msra.mxu0 0.0
        %1570 = vmatprep.subr.mxu0 0.0
        %1571 = vmatpush1.msra.mxu0 0.0
        %1572 = vmatprep.subr.mxu0 0.0
        %1573 = vmatpush1.msra.mxu0 0.0
        %1574 = vmatprep.subr.mxu0 0.0
        %1575 = vmatpush1.msra.mxu0 0.0
        %1576 = vmatprep.subr.mxu0 0.0
        %1577 = vmatpush1.msra.mxu0 0.0
        %1578 = vmatprep.subr.mxu0 0.0
        %1579 = vmatpush1.msra.mxu0 0.0
        %1580 = vmatprep.mubr.f32.mxu0 0.0
        %v1581 = vand.u32 %v1019, 4294901760
        %v1582 = vsub.f32 %v1019, %v1581
        %1583 = vmatmul.mubr.f32.gmra.mrb[0].mxu0 %v1582
        %v1584 = vpop.f32.mrb[0].mxu0
        %v1585 = vadd.f32 %v1407, %v1584
        %v1586 = vpop.f32.mrb[0].mxu0
        %1587 = vmatprep.mubr.f32.mxu0 0.0
        %v1588 = vand.u32 %v1022, 4294901760
        %v1589 = vsub.f32 %v1022, %v1588
        %1590 = vmatmul.mubr.f32.gmra.mrb[0].mxu0 %v1589
        %v1591 = vpop.f32.mrb[0].mxu0
        %v1592 = vadd.f32 %v1413, %v1591
        %v1593 = vpop.f32.mrb[0].mxu0
        %1594 = vmatprep.mubr.f32.mxu0 0.0
        %v1595 = vand.u32 %v1025, 4294901760
        %v1596 = vsub.f32 %v1025, %v1595
        %1597 = vmatmul.mubr.f32.gmra.mrb[0].mxu0 %v1596
        %v1598 = vpop.f32.mrb[0].mxu0
        %v1599 = vadd.f32 %v1419, %v1598
        %v1600 = vpop.f32.mrb[0].mxu0
        %1601 = vmatprep.mubr.f32.mxu0 0.0
        %v1602 = vand.u32 %v1028, 4294901760
        %v1603 = vsub.f32 %v1028, %v1602
        %1604 = vmatmul.mubr.f32.gmra.mrb[0].mxu0 %v1603
        %v1605 = vpop.f32.mrb[0].mxu0
        %v1606 = vadd.f32 %v1425, %v1605
        %v1607 = vpop.f32.mrb[0].mxu0
        %1608 = vmatprep.mubr.f32.mxu0 0.0
        %v1609 = vand.u32 %v1031, 4294901760
        %v1610 = vsub.f32 %v1031, %v1609
        %1611 = vmatmul.mubr.f32.gmra.mrb[0].mxu0 %v1610
        %v1612 = vpop.f32.mrb[0].mxu0
        %v1613 = vadd.f32 %v1431, %v1612
        %v1614 = vpop.f32.mrb[0].mxu0
        %1615 = vmatprep.mubr.f32.mxu0 0.0
        %v1616 = vand.u32 %v1034, 4294901760
        %v1617 = vsub.f32 %v1034, %v1616
        %1618 = vmatmul.mubr.f32.gmra.mrb[0].mxu0 %v1617
        %v1619 = vpop.f32.mrb[0].mxu0
        %v1620 = vadd.f32 %v1437, %v1619
        %v1621 = vpop.f32.mrb[0].mxu0
        %1622 = vmatprep.mubr.f32.mxu0 0.0
        %v1623 = vand.u32 %v1037, 4294901760
        %v1624 = vsub.f32 %v1037, %v1623
        %1625 = vmatmul.mubr.f32.gmra.mrb[0].mxu0 %v1624
        %v1626 = vpop.f32.mrb[0].mxu0
        %v1627 = vadd.f32 %v1443, %v1626
        %v1628 = vpop.f32.mrb[0].mxu0
        %1629 = vmatprep.mubr.f32.mxu0 0.0
        %v1630 = vand.u32 %v1040, 4294901760
        %v1631 = vsub.f32 %v1040, %v1630
        %1632 = vmatmul.mubr.f32.gmra.mrb[0].mxu0 %v1631
        %v1633 = vpop.f32.mrb[0].mxu0
        %v1634 = vadd.f32 %v1449, %v1633
        %v1635 = vpop.f32.mrb[0].mxu0
        %1636 = vmatprep.mubr.f32.mxu0 0.0
        %v1637 = vand.u32 %v1043, 4294901760
        %v1638 = vsub.f32 %v1043, %v1637
        %1639 = vmatmul.mubr.f32.gmra.mrb[0].mxu0 %v1638
        %v1640 = vpop.f32.mrb[0].mxu0
        %v1641 = vadd.f32 %v1455, %v1640
        %v1642 = vpop.f32.mrb[0].mxu0
        %1643 = vmatprep.mubr.f32.mxu0 0.0
        %v1644 = vand.u32 %v1046, 4294901760
        %v1645 = vsub.f32 %v1046, %v1644
        %1646 = vmatmul.mubr.f32.gmra.mrb[0].mxu0 %v1645
        %v1647 = vpop.f32.mrb[0].mxu0
        %v1648 = vadd.f32 %v1461, %v1647
        %v1649 = vpop.f32.mrb[0].mxu0
        %1650 = vmatprep.mubr.f32.mxu0 0.0
        %v1651 = vand.u32 %v1049, 4294901760
        %v1652 = vsub.f32 %v1049, %v1651
        %1653 = vmatmul.mubr.f32.gmra.mrb[0].mxu0 %v1652
        %v1654 = vpop.f32.mrb[0].mxu0
        %v1655 = vadd.f32 %v1467, %v1654
        %v1656 = vpop.f32.mrb[0].mxu0
        %1657 = vmatprep.mubr.f32.mxu0 0.0
        %v1658 = vand.u32 %v1052, 4294901760
        %v1659 = vsub.f32 %v1052, %v1658
        %1660 = vmatmul.mubr.f32.gmra.mrb[0].mxu0 %v1659
        %v1661 = vpop.f32.mrb[0].mxu0
        %v1662 = vadd.f32 %v1473, %v1661
        %v1663 = vpop.f32.mrb[0].mxu0
        %1664 = vmatprep.mubr.f32.mxu0 0.0
        %v1665 = vand.u32 %v1055, 4294901760
        %v1666 = vsub.f32 %v1055, %v1665
        %1667 = vmatmul.mubr.f32.gmra.mrb[0].mxu0 %v1666
        %v1668 = vpop.f32.mrb[0].mxu0
        %v1669 = vadd.f32 %v1479, %v1668
        %v1670 = vpop.f32.mrb[0].mxu0
        %1671 = vmatprep.mubr.f32.mxu0 0.0
        %v1672 = vand.u32 %v1058, 4294901760
        %v1673 = vsub.f32 %v1058, %v1672
        %1674 = vmatmul.mubr.f32.gmra.mrb[0].mxu0 %v1673
        %v1675 = vpop.f32.mrb[0].mxu0
        %v1676 = vadd.f32 %v1485, %v1675
        %v1677 = vpop.f32.mrb[0].mxu0
        %1678 = vmatprep.mubr.f32.mxu0 0.0
        %v1679 = vand.u32 %v1061, 4294901760
        %v1680 = vsub.f32 %v1061, %v1679
        %1681 = vmatmul.mubr.f32.gmra.mrb[0].mxu0 %v1680
        %v1682 = vpop.f32.mrb[0].mxu0
        %v1683 = vadd.f32 %v1491, %v1682
        %v1684 = vpop.f32.mrb[0].mxu0
        %1685 = vmatprep.mubr.f32.mxu0 0.0
        %v1686 = vand.u32 %v1064, 4294901760
        %v1687 = vsub.f32 %v1064, %v1686
        %1688 = vmatmul.mubr.f32.gmra.mrb[0].mxu0 %v1687
        %v1689 = vpop.f32.mrb[0].mxu0
        %v1690 = vadd.f32 %v1497, %v1689
        %v1691 = vpop.f32.mrb[0].mxu0
        %1692 = vdwg.mxu0
        %1693 = vmatprep.subr.mxu0 0.0
        %v1694 = vand.u32 %v1009, 4294901760
        %1695 = vmatpush1.msra.mxu0 %v1694
        %1696 = vmatprep.subr.mxu0 0.0
        %v1697 = vand.u32 %v1010, 4294901760
        %1698 = vmatpush1.msra.mxu0 %v1697
        %1699 = vmatprep.subr.mxu0 0.0
        %v1700 = vand.u32 %v1011, 4294901760
        %1701 = vmatpush1.msra.mxu0 %v1700
        %1702 = vmatprep.subr.mxu0 0.0
        %v1703 = vand.u32 %v1012, 4294901760
        %1704 = vmatpush1.msra.mxu0 %v1703
        %1705 = vmatprep.subr.mxu0 0.0
        %v1706 = vand.u32 %v1013, 4294901760
        %1707 = vmatpush1.msra.mxu0 %v1706
        %1708 = vmatprep.subr.mxu0 0.0
        %v1709 = vand.u32 %v1014, 4294901760
        %1710 = vmatpush1.msra.mxu0 %v1709
        %1711 = vmatprep.subr.mxu0 0.0
        %v1712 = vand.u32 %v1015, 4294901760
        %1713 = vmatpush1.msra.mxu0 %v1712
        %1714 = vmatprep.subr.mxu0 0.0
        %v1715 = vand.u32 %v1016, 4294901760
        %1716 = vmatpush1.msra.mxu0 %v1715
        %1717 = vmatprep.subr.mxu0 0.0
        %1718 = vmatpush1.msra.mxu0 0.0
        %1719 = vmatprep.subr.mxu0 0.0
        %1720 = vmatpush1.msra.mxu0 0.0
        %1721 = vmatprep.subr.mxu0 0.0
        %1722 = vmatpush1.msra.mxu0 0.0
        %1723 = vmatprep.subr.mxu0 0.0
        %1724 = vmatpush1.msra.mxu0 0.0
        %1725 = vmatprep.subr.mxu0 0.0
        %1726 = vmatpush1.msra.mxu0 0.0
        %1727 = vmatprep.subr.mxu0 0.0
        %1728 = vmatpush1.msra.mxu0 0.0
        %1729 = vmatprep.subr.mxu0 0.0
        %1730 = vmatpush1.msra.mxu0 0.0
        %1731 = vmatprep.subr.mxu0 0.0
        %1732 = vmatpush1.msra.mxu0 0.0
        %1733 = vmatprep.subr.mxu0 0.0
        %1734 = vmatpush1.msra.mxu0 0.0
        %1735 = vmatprep.subr.mxu0 0.0
        %1736 = vmatpush1.msra.mxu0 0.0
        %1737 = vmatprep.subr.mxu0 0.0
        %1738 = vmatpush1.msra.mxu0 0.0
        %1739 = vmatprep.subr.mxu0 0.0
        %1740 = vmatpush1.msra.mxu0 0.0
        %1741 = vmatprep.subr.mxu0 0.0
        %1742 = vmatpush1.msra.mxu0 0.0
        %1743 = vmatprep.subr.mxu0 0.0
        %1744 = vmatpush1.msra.mxu0 0.0
        %1745 = vmatprep.subr.mxu0 0.0
        %1746 = vmatpush1.msra.mxu0 0.0
        %1747 = vmatprep.subr.mxu0 0.0
        %1748 = vmatpush1.msra.mxu0 0.0
        %1749 = vmatprep.subr.mxu0 0.0
        %1750 = vmatpush1.msra.mxu0 0.0
        %1751 = vmatprep.subr.mxu0 0.0
        %1752 = vmatpush1.msra.mxu0 0.0
        %1753 = vmatprep.subr.mxu0 0.0
        %1754 = vmatpush1.msra.mxu0 0.0
        %1755 = vmatprep.subr.mxu0 0.0
        %1756 = vmatpush1.msra.mxu0 0.0
        %1757 = vmatprep.subr.mxu0 0.0
        %1758 = vmatpush1.msra.mxu0 0.0
        %1759 = vmatprep.subr.mxu0 0.0
        %1760 = vmatpush1.msra.mxu0 0.0
        %1761 = vmatprep.subr.mxu0 0.0
        %1762 = vmatpush1.msra.mxu0 0.0
        %1763 = vmatprep.subr.mxu0 0.0
        %1764 = vmatpush1.msra.mxu0 0.0
        %1765 = vmatprep.mubr.f32.mxu0 0.0
        %v1766 = vand.u32 %v1019, 4294901760
        %v1767 = vsub.f32 %v1019, %v1766
        %v1768 = vand.u32 %v1767, 4294901760
        %1769 = vmatmul.mubr.f32.gmra.mrb[0].mxu0 %v1768
        %v1770 = vpop.f32.mrb[0].mxu0
        %v1771 = vadd.f32 %v1585, %v1770
        %v1772 = vpop.f32.mrb[0].mxu0
        %1773 = vmatprep.mubr.f32.mxu0 0.0
        %v1774 = vand.u32 %v1022, 4294901760
        %v1775 = vsub.f32 %v1022, %v1774
        %v1776 = vand.u32 %v1775, 4294901760
        %1777 = vmatmul.mubr.f32.gmra.mrb[0].mxu0 %v1776
        %v1778 = vpop.f32.mrb[0].mxu0
        %v1779 = vadd.f32 %v1592, %v1778
        %v1780 = vpop.f32.mrb[0].mxu0
        %1781 = vmatprep.mubr.f32.mxu0 0.0
        %v1782 = vand.u32 %v1025, 4294901760
        %v1783 = vsub.f32 %v1025, %v1782
        %v1784 = vand.u32 %v1783, 4294901760
        %1785 = vmatmul.mubr.f32.gmra.mrb[0].mxu0 %v1784
        %v1786 = vpop.f32.mrb[0].mxu0
        %v1787 = vadd.f32 %v1599, %v1786
        %v1788 = vpop.f32.mrb[0].mxu0
        %1789 = vmatprep.mubr.f32.mxu0 0.0
        %v1790 = vand.u32 %v1028, 4294901760
        %v1791 = vsub.f32 %v1028, %v1790
        %v1792 = vand.u32 %v1791, 4294901760
        %1793 = vmatmul.mubr.f32.gmra.mrb[0].mxu0 %v1792
        %v1794 = vpop.f32.mrb[0].mxu0
        %v1795 = vadd.f32 %v1606, %v1794
        %v1796 = vpop.f32.mrb[0].mxu0
        %1797 = vmatprep.mubr.f32.mxu0 0.0
        %v1798 = vand.u32 %v1031, 4294901760
        %v1799 = vsub.f32 %v1031, %v1798
        %v1800 = vand.u32 %v1799, 4294901760
        %1801 = vmatmul.mubr.f32.gmra.mrb[0].mxu0 %v1800
        %v1802 = vpop.f32.mrb[0].mxu0
        %v1803 = vadd.f32 %v1613, %v1802
        %v1804 = vpop.f32.mrb[0].mxu0
        %1805 = vmatprep.mubr.f32.mxu0 0.0
        %v1806 = vand.u32 %v1034, 4294901760
        %v1807 = vsub.f32 %v1034, %v1806
        %v1808 = vand.u32 %v1807, 4294901760
        %1809 = vmatmul.mubr.f32.gmra.mrb[0].mxu0 %v1808
        %v1810 = vpop.f32.mrb[0].mxu0
        %v1811 = vadd.f32 %v1620, %v1810
        %v1812 = vpop.f32.mrb[0].mxu0
        %1813 = vmatprep.mubr.f32.mxu0 0.0
        %v1814 = vand.u32 %v1037, 4294901760
        %v1815 = vsub.f32 %v1037, %v1814
        %v1816 = vand.u32 %v1815, 4294901760
        %1817 = vmatmul.mubr.f32.gmra.mrb[0].mxu0 %v1816
        %v1818 = vpop.f32.mrb[0].mxu0
        %v1819 = vadd.f32 %v1627, %v1818
        %v1820 = vpop.f32.mrb[0].mxu0
        %1821 = vmatprep.mubr.f32.mxu0 0.0
        %v1822 = vand.u32 %v1040, 4294901760
        %v1823 = vsub.f32 %v1040, %v1822
        %v1824 = vand.u32 %v1823, 4294901760
        %1825 = vmatmul.mubr.f32.gmra.mrb[0].mxu0 %v1824
        %v1826 = vpop.f32.mrb[0].mxu0
        %v1827 = vadd.f32 %v1634, %v1826
        %v1828 = vpop.f32.mrb[0].mxu0
        %1829 = vmatprep.mubr.f32.mxu0 0.0
        %v1830 = vand.u32 %v1043, 4294901760
        %v1831 = vsub.f32 %v1043, %v1830
        %v1832 = vand.u32 %v1831, 4294901760
        %1833 = vmatmul.mubr.f32.gmra.mrb[0].mxu0 %v1832
        %v1834 = vpop.f32.mrb[0].mxu0
        %v1835 = vadd.f32 %v1641, %v1834
        %v1836 = vpop.f32.mrb[0].mxu0
        %1837 = vmatprep.mubr.f32.mxu0 0.0
        %v1838 = vand.u32 %v1046, 4294901760
        %v1839 = vsub.f32 %v1046, %v1838
        %v1840 = vand.u32 %v1839, 4294901760
        %1841 = vmatmul.mubr.f32.gmra.mrb[0].mxu0 %v1840
        %v1842 = vpop.f32.mrb[0].mxu0
        %v1843 = vadd.f32 %v1648, %v1842
        %v1844 = vpop.f32.mrb[0].mxu0
        %1845 = vmatprep.mubr.f32.mxu0 0.0
        %v1846 = vand.u32 %v1049, 4294901760
        %v1847 = vsub.f32 %v1049, %v1846
        %v1848 = vand.u32 %v1847, 4294901760
        %1849 = vmatmul.mubr.f32.gmra.mrb[0].mxu0 %v1848
        %v1850 = vpop.f32.mrb[0].mxu0
        %v1851 = vadd.f32 %v1655, %v1850
        %v1852 = vpop.f32.mrb[0].mxu0
        %1853 = vmatprep.mubr.f32.mxu0 0.0
        %v1854 = vand.u32 %v1052, 4294901760
        %v1855 = vsub.f32 %v1052, %v1854
        %v1856 = vand.u32 %v1855, 4294901760
        %1857 = vmatmul.mubr.f32.gmra.mrb[0].mxu0 %v1856
        %v1858 = vpop.f32.mrb[0].mxu0
        %v1859 = vadd.f32 %v1662, %v1858
        %v1860 = vpop.f32.mrb[0].mxu0
        %1861 = vmatprep.mubr.f32.mxu0 0.0
        %v1862 = vand.u32 %v1055, 4294901760
        %v1863 = vsub.f32 %v1055, %v1862
        %v1864 = vand.u32 %v1863, 4294901760
        %1865 = vmatmul.mubr.f32.gmra.mrb[0].mxu0 %v1864
        %v1866 = vpop.f32.mrb[0].mxu0
        %v1867 = vadd.f32 %v1669, %v1866
        %v1868 = vpop.f32.mrb[0].mxu0
        %1869 = vmatprep.mubr.f32.mxu0 0.0
        %v1870 = vand.u32 %v1058, 4294901760
        %v1871 = vsub.f32 %v1058, %v1870
        %v1872 = vand.u32 %v1871, 4294901760
        %1873 = vmatmul.mubr.f32.gmra.mrb[0].mxu0 %v1872
        %v1874 = vpop.f32.mrb[0].mxu0
        %v1875 = vadd.f32 %v1676, %v1874
        %v1876 = vpop.f32.mrb[0].mxu0
        %1877 = vmatprep.mubr.f32.mxu0 0.0
        %v1878 = vand.u32 %v1061, 4294901760
        %v1879 = vsub.f32 %v1061, %v1878
        %v1880 = vand.u32 %v1879, 4294901760
        %1881 = vmatmul.mubr.f32.gmra.mrb[0].mxu0 %v1880
        %v1882 = vpop.f32.mrb[0].mxu0
        %v1883 = vadd.f32 %v1683, %v1882
        %v1884 = vpop.f32.mrb[0].mxu0
        %1885 = vmatprep.mubr.f32.mxu0 0.0
        %v1886 = vand.u32 %v1064, 4294901760
        %v1887 = vsub.f32 %v1064, %v1886
        %v1888 = vand.u32 %v1887, 4294901760
        %1889 = vmatmul.mubr.f32.gmra.mrb[0].mxu0 %v1888
        %v1890 = vpop.f32.mrb[0].mxu0
        %v1891 = vadd.f32 %v1690, %v1890
        %v1892 = vpop.f32.mrb[0].mxu0
        %1893 = vdwg.mxu0
        %1894 = vmatprep.subr.mxu0 0.0
        %v1895 = vand.u32 %v1009, 4294901760
        %v1896 = vsub.f32 %v1009, %v1895
        %v1897 = vand.u32 %v1896, 4294901760
        %1898 = vmatpush1.msra.mxu0 %v1897
        %1899 = vmatprep.subr.mxu0 0.0
        %v1900 = vand.u32 %v1010, 4294901760
        %v1901 = vsub.f32 %v1010, %v1900
        %v1902 = vand.u32 %v1901, 4294901760
        %1903 = vmatpush1.msra.mxu0 %v1902
        %1904 = vmatprep.subr.mxu0 0.0
        %v1905 = vand.u32 %v1011, 4294901760
        %v1906 = vsub.f32 %v1011, %v1905
        %v1907 = vand.u32 %v1906, 4294901760
        %1908 = vmatpush1.msra.mxu0 %v1907
        %1909 = vmatprep.subr.mxu0 0.0
        %v1910 = vand.u32 %v1012, 4294901760
        %v1911 = vsub.f32 %v1012, %v1910
        %v1912 = vand.u32 %v1911, 4294901760
        %1913 = vmatpush1.msra.mxu0 %v1912
        %1914 = vmatprep.subr.mxu0 0.0
        %v1915 = vand.u32 %v1013, 4294901760
        %v1916 = vsub.f32 %v1013, %v1915
        %v1917 = vand.u32 %v1916, 4294901760
        %1918 = vmatpush1.msra.mxu0 %v1917
        %1919 = vmatprep.subr.mxu0 0.0
        %v1920 = vand.u32 %v1014, 4294901760
        %v1921 = vsub.f32 %v1014, %v1920
        %v1922 = vand.u32 %v1921, 4294901760
        %1923 = vmatpush1.msra.mxu0 %v1922
        %1924 = vmatprep.subr.mxu0 0.0
        %v1925 = vand.u32 %v1015, 4294901760
        %v1926 = vsub.f32 %v1015, %v1925
        %v1927 = vand.u32 %v1926, 4294901760
        %1928 = vmatpush1.msra.mxu0 %v1927
        %1929 = vmatprep.subr.mxu0 0.0
        %v1930 = vand.u32 %v1016, 4294901760
        %v1931 = vsub.f32 %v1016, %v1930
        %v1932 = vand.u32 %v1931, 4294901760
        %1933 = vmatpush1.msra.mxu0 %v1932
        %1934 = vmatprep.subr.mxu0 0.0
        %1935 = vmatpush1.msra.mxu0 0.0
        %1936 = vmatprep.subr.mxu0 0.0
        %1937 = vmatpush1.msra.mxu0 0.0
        %1938 = vmatprep.subr.mxu0 0.0
        %1939 = vmatpush1.msra.mxu0 0.0
        %1940 = vmatprep.subr.mxu0 0.0
        %1941 = vmatpush1.msra.mxu0 0.0
        %1942 = vmatprep.subr.mxu0 0.0
        %1943 = vmatpush1.msra.mxu0 0.0
        %1944 = vmatprep.subr.mxu0 0.0
        %1945 = vmatpush1.msra.mxu0 0.0
        %1946 = vmatprep.subr.mxu0 0.0
        %1947 = vmatpush1.msra.mxu0 0.0
        %1948 = vmatprep.subr.mxu0 0.0
        %1949 = vmatpush1.msra.mxu0 0.0
        %1950 = vmatprep.subr.mxu0 0.0
        %1951 = vmatpush1.msra.mxu0 0.0
        %1952 = vmatprep.subr.mxu0 0.0
        %1953 = vmatpush1.msra.mxu0 0.0
        %1954 = vmatprep.subr.mxu0 0.0
        %1955 = vmatpush1.msra.mxu0 0.0
        %1956 = vmatprep.subr.mxu0 0.0
        %1957 = vmatpush1.msra.mxu0 0.0
        %1958 = vmatprep.subr.mxu0 0.0
        %1959 = vmatpush1.msra.mxu0 0.0
        %1960 = vmatprep.subr.mxu0 0.0
        %1961 = vmatpush1.msra.mxu0 0.0
        %1962 = vmatprep.subr.mxu0 0.0
        %1963 = vmatpush1.msra.mxu0 0.0
        %1964 = vmatprep.subr.mxu0 0.0
        %1965 = vmatpush1.msra.mxu0 0.0
        %1966 = vmatprep.subr.mxu0 0.0
        %1967 = vmatpush1.msra.mxu0 0.0
        %1968 = vmatprep.subr.mxu0 0.0
        %1969 = vmatpush1.msra.mxu0 0.0
        %1970 = vmatprep.subr.mxu0 0.0
        %1971 = vmatpush1.msra.mxu0 0.0
        %1972 = vmatprep.subr.mxu0 0.0
        %1973 = vmatpush1.msra.mxu0 0.0
        %1974 = vmatprep.subr.mxu0 0.0
        %1975 = vmatpush1.msra.mxu0 0.0
        %1976 = vmatprep.subr.mxu0 0.0
        %1977 = vmatpush1.msra.mxu0 0.0
        %1978 = vmatprep.subr.mxu0 0.0
        %1979 = vmatpush1.msra.mxu0 0.0
        %1980 = vmatprep.subr.mxu0 0.0
        %1981 = vmatpush1.msra.mxu0 0.0
        %1982 = vmatprep.mubr.f32.mxu0 0.0
        %v1983 = vand.u32 %v1019, 4294901760
        %1984 = vmatmul.mubr.f32.gmra.mrb[0].mxu0 %v1983
        %v1985 = vpop.f32.mrb[0].mxu0
        %v1986 = vadd.f32 %v1771, %v1985
        %v1987 = vpop.f32.mrb[0].mxu0
        %1988 = vmatprep.mubr.f32.mxu0 0.0
        %v1989 = vand.u32 %v1022, 4294901760
        %1990 = vmatmul.mubr.f32.gmra.mrb[0].mxu0 %v1989
        %v1991 = vpop.f32.mrb[0].mxu0
        %v1992 = vadd.f32 %v1779, %v1991
        %v1993 = vpop.f32.mrb[0].mxu0
        %1994 = vmatprep.mubr.f32.mxu0 0.0
        %v1995 = vand.u32 %v1025, 4294901760
        %1996 = vmatmul.mubr.f32.gmra.mrb[0].mxu0 %v1995
        %v1997 = vpop.f32.mrb[0].mxu0
        %v1998 = vadd.f32 %v1787, %v1997
        %v1999 = vpop.f32.mrb[0].mxu0
        %2000 = vmatprep.mubr.f32.mxu0 0.0
        %v2001 = vand.u32 %v1028, 4294901760
        %2002 = vmatmul.mubr.f32.gmra.mrb[0].mxu0 %v2001
        %v2003 = vpop.f32.mrb[0].mxu0
        %v2004 = vadd.f32 %v1795, %v2003
        %v2005 = vpop.f32.mrb[0].mxu0
        %2006 = vmatprep.mubr.f32.mxu0 0.0
        %v2007 = vand.u32 %v1031, 4294901760
        %2008 = vmatmul.mubr.f32.gmra.mrb[0].mxu0 %v2007
        %v2009 = vpop.f32.mrb[0].mxu0
        %v2010 = vadd.f32 %v1803, %v2009
        %v2011 = vpop.f32.mrb[0].mxu0
        %2012 = vmatprep.mubr.f32.mxu0 0.0
        %v2013 = vand.u32 %v1034, 4294901760
        %2014 = vmatmul.mubr.f32.gmra.mrb[0].mxu0 %v2013
        %v2015 = vpop.f32.mrb[0].mxu0
        %v2016 = vadd.f32 %v1811, %v2015
        %v2017 = vpop.f32.mrb[0].mxu0
        %2018 = vmatprep.mubr.f32.mxu0 0.0
        %v2019 = vand.u32 %v1037, 4294901760
        %2020 = vmatmul.mubr.f32.gmra.mrb[0].mxu0 %v2019
        %v2021 = vpop.f32.mrb[0].mxu0
        %v2022 = vadd.f32 %v1819, %v2021
        %v2023 = vpop.f32.mrb[0].mxu0
        %2024 = vmatprep.mubr.f32.mxu0 0.0
        %v2025 = vand.u32 %v1040, 4294901760
        %2026 = vmatmul.mubr.f32.gmra.mrb[0].mxu0 %v2025
        %v2027 = vpop.f32.mrb[0].mxu0
        %v2028 = vadd.f32 %v1827, %v2027
        %v2029 = vpop.f32.mrb[0].mxu0
        %2030 = vmatprep.mubr.f32.mxu0 0.0
        %v2031 = vand.u32 %v1043, 4294901760
        %2032 = vmatmul.mubr.f32.gmra.mrb[0].mxu0 %v2031
        %v2033 = vpop.f32.mrb[0].mxu0
        %v2034 = vadd.f32 %v1835, %v2033
        %v2035 = vpop.f32.mrb[0].mxu0
        %2036 = vmatprep.mubr.f32.mxu0 0.0
        %v2037 = vand.u32 %v1046, 4294901760
        %2038 = vmatmul.mubr.f32.gmra.mrb[0].mxu0 %v2037
        %v2039 = vpop.f32.mrb[0].mxu0
        %v2040 = vadd.f32 %v1843, %v2039
        %v2041 = vpop.f32.mrb[0].mxu0
        %2042 = vmatprep.mubr.f32.mxu0 0.0
        %v2043 = vand.u32 %v1049, 4294901760
        %2044 = vmatmul.mubr.f32.gmra.mrb[0].mxu0 %v2043
        %v2045 = vpop.f32.mrb[0].mxu0
        %v2046 = vadd.f32 %v1851, %v2045
        %v2047 = vpop.f32.mrb[0].mxu0
        %2048 = vmatprep.mubr.f32.mxu0 0.0
        %v2049 = vand.u32 %v1052, 4294901760
        %2050 = vmatmul.mubr.f32.gmra.mrb[0].mxu0 %v2049
        %v2051 = vpop.f32.mrb[0].mxu0
        %v2052 = vadd.f32 %v1859, %v2051
        %v2053 = vpop.f32.mrb[0].mxu0
        %2054 = vmatprep.mubr.f32.mxu0 0.0
        %v2055 = vand.u32 %v1055, 4294901760
        %2056 = vmatmul.mubr.f32.gmra.mrb[0].mxu0 %v2055
        %v2057 = vpop.f32.mrb[0].mxu0
        %v2058 = vadd.f32 %v1867, %v2057
        %v2059 = vpop.f32.mrb[0].mxu0
        %2060 = vmatprep.mubr.f32.mxu0 0.0
        %v2061 = vand.u32 %v1058, 4294901760
        %2062 = vmatmul.mubr.f32.gmra.mrb[0].mxu0 %v2061
        %v2063 = vpop.f32.mrb[0].mxu0
        %v2064 = vadd.f32 %v1875, %v2063
        %v2065 = vpop.f32.mrb[0].mxu0
        %2066 = vmatprep.mubr.f32.mxu0 0.0
        %v2067 = vand.u32 %v1061, 4294901760
        %2068 = vmatmul.mubr.f32.gmra.mrb[0].mxu0 %v2067
        %v2069 = vpop.f32.mrb[0].mxu0
        %v2070 = vadd.f32 %v1883, %v2069
        %v2071 = vpop.f32.mrb[0].mxu0
        %2072 = vmatprep.mubr.f32.mxu0 0.0
        %v2073 = vand.u32 %v1064, 4294901760
        %2074 = vmatmul.mubr.f32.gmra.mrb[0].mxu0 %v2073
        %v2075 = vpop.f32.mrb[0].mxu0
        %v2076 = vadd.f32 %v1891, %v2075
        %v2077 = vpop.f32.mrb[0].mxu0
        %2078 = vdwg.mxu0
        %2079 = vmatprep.subr.mxu0 0.0
        %v2080 = vand.u32 %v1009, 4294901760
        %2081 = vmatpush1.msra.mxu0 %v2080
        %2082 = vmatprep.subr.mxu0 0.0
        %v2083 = vand.u32 %v1010, 4294901760
        %2084 = vmatpush1.msra.mxu0 %v2083
        %2085 = vmatprep.subr.mxu0 0.0
        %v2086 = vand.u32 %v1011, 4294901760
        %2087 = vmatpush1.msra.mxu0 %v2086
        %2088 = vmatprep.subr.mxu0 0.0
        %v2089 = vand.u32 %v1012, 4294901760
        %2090 = vmatpush1.msra.mxu0 %v2089
        %2091 = vmatprep.subr.mxu0 0.0
        %v2092 = vand.u32 %v1013, 4294901760
        %2093 = vmatpush1.msra.mxu0 %v2092
        %2094 = vmatprep.subr.mxu0 0.0
        %v2095 = vand.u32 %v1014, 4294901760
        %2096 = vmatpush1.msra.mxu0 %v2095
        %2097 = vmatprep.subr.mxu0 0.0
        %v2098 = vand.u32 %v1015, 4294901760
        %2099 = vmatpush1.msra.mxu0 %v2098
        %2100 = vmatprep.subr.mxu0 0.0
        %v2101 = vand.u32 %v1016, 4294901760
        %2102 = vmatpush1.msra.mxu0 %v2101
        %2103 = vmatprep.subr.mxu0 0.0
        %2104 = vmatpush1.msra.mxu0 0.0
        %2105 = vmatprep.subr.mxu0 0.0
        %2106 = vmatpush1.msra.mxu0 0.0
        %2107 = vmatprep.subr.mxu0 0.0
        %2108 = vmatpush1.msra.mxu0 0.0
        %2109 = vmatprep.subr.mxu0 0.0
        %2110 = vmatpush1.msra.mxu0 0.0
        %2111 = vmatprep.subr.mxu0 0.0
        %2112 = vmatpush1.msra.mxu0 0.0
        %2113 = vmatprep.subr.mxu0 0.0
        %2114 = vmatpush1.msra.mxu0 0.0
        %2115 = vmatprep.subr.mxu0 0.0
        %2116 = vmatpush1.msra.mxu0 0.0
        %2117 = vmatprep.subr.mxu0 0.0
        %2118 = vmatpush1.msra.mxu0 0.0
        %2119 = vmatprep.subr.mxu0 0.0
        %2120 = vmatpush1.msra.mxu0 0.0
        %2121 = vmatprep.subr.mxu0 0.0
        %2122 = vmatpush1.msra.mxu0 0.0
        %2123 = vmatprep.subr.mxu0 0.0
        %2124 = vmatpush1.msra.mxu0 0.0
        %2125 = vmatprep.subr.mxu0 0.0
        %2126 = vmatpush1.msra.mxu0 0.0
        %2127 = vmatprep.subr.mxu0 0.0
        %2128 = vmatpush1.msra.mxu0 0.0
        %2129 = vmatprep.subr.mxu0 0.0
        %2130 = vmatpush1.msra.mxu0 0.0
        %2131 = vmatprep.subr.mxu0 0.0
        %2132 = vmatpush1.msra.mxu0 0.0
        %2133 = vmatprep.subr.mxu0 0.0
        %2134 = vmatpush1.msra.mxu0 0.0
        %2135 = vmatprep.subr.mxu0 0.0
        %2136 = vmatpush1.msra.mxu0 0.0
        %2137 = vmatprep.subr.mxu0 0.0
        %2138 = vmatpush1.msra.mxu0 0.0
        %2139 = vmatprep.subr.mxu0 0.0
        %2140 = vmatpush1.msra.mxu0 0.0
        %2141 = vmatprep.subr.mxu0 0.0
        %2142 = vmatpush1.msra.mxu0 0.0
        %2143 = vmatprep.subr.mxu0 0.0
        %2144 = vmatpush1.msra.mxu0 0.0
        %2145 = vmatprep.subr.mxu0 0.0
        %2146 = vmatpush1.msra.mxu0 0.0
        %2147 = vmatprep.subr.mxu0 0.0
        %2148 = vmatpush1.msra.mxu0 0.0
        %2149 = vmatprep.subr.mxu0 0.0
        %2150 = vmatpush1.msra.mxu0 0.0
        %2151 = vmatprep.mubr.f32.mxu0 0.0
        %v2152 = vand.u32 %v1019, 4294901760
        %2153 = vmatmul.mubr.f32.gmra.mrb[0].mxu0 %v2152
        %v2154 = vpop.f32.mrb[0].mxu0
        %v2155 = vadd.f32 %v1986, %v2154
        %v2156 = vpop.f32.mrb[0].mxu0
        %2157 = vmatprep.mubr.f32.mxu0 0.0
        %v2158 = vand.u32 %v1022, 4294901760
        %2159 = vmatmul.mubr.f32.gmra.mrb[0].mxu0 %v2158
        %v2160 = vpop.f32.mrb[0].mxu0
        %v2161 = vadd.f32 %v1992, %v2160
        %v2162 = vpop.f32.mrb[0].mxu0
        %2163 = vmatprep.mubr.f32.mxu0 0.0
        %v2164 = vand.u32 %v1025, 4294901760
        %2165 = vmatmul.mubr.f32.gmra.mrb[0].mxu0 %v2164
        %v2166 = vpop.f32.mrb[0].mxu0
        %v2167 = vadd.f32 %v1998, %v2166
        %v2168 = vpop.f32.mrb[0].mxu0
        %2169 = vmatprep.mubr.f32.mxu0 0.0
        %v2170 = vand.u32 %v1028, 4294901760
        %2171 = vmatmul.mubr.f32.gmra.mrb[0].mxu0 %v2170
        %v2172 = vpop.f32.mrb[0].mxu0
        %v2173 = vadd.f32 %v2004, %v2172
        %v2174 = vpop.f32.mrb[0].mxu0
        %2175 = vmatprep.mubr.f32.mxu0 0.0
        %v2176 = vand.u32 %v1031, 4294901760
        %2177 = vmatmul.mubr.f32.gmra.mrb[0].mxu0 %v2176
        %v2178 = vpop.f32.mrb[0].mxu0
        %v2179 = vadd.f32 %v2010, %v2178
        %v2180 = vpop.f32.mrb[0].mxu0
        %2181 = vmatprep.mubr.f32.mxu0 0.0
        %v2182 = vand.u32 %v1034, 4294901760
        %2183 = vmatmul.mubr.f32.gmra.mrb[0].mxu0 %v2182
        %v2184 = vpop.f32.mrb[0].mxu0
        %v2185 = vadd.f32 %v2016, %v2184
        %v2186 = vpop.f32.mrb[0].mxu0
        %2187 = vmatprep.mubr.f32.mxu0 0.0
        %v2188 = vand.u32 %v1037, 4294901760
        %2189 = vmatmul.mubr.f32.gmra.mrb[0].mxu0 %v2188
        %v2190 = vpop.f32.mrb[0].mxu0
        %v2191 = vadd.f32 %v2022, %v2190
        %v2192 = vpop.f32.mrb[0].mxu0
        %2193 = vmatprep.mubr.f32.mxu0 0.0
        %v2194 = vand.u32 %v1040, 4294901760
        %2195 = vmatmul.mubr.f32.gmra.mrb[0].mxu0 %v2194
        %v2196 = vpop.f32.mrb[0].mxu0
        %v2197 = vadd.f32 %v2028, %v2196
        %v2198 = vpop.f32.mrb[0].mxu0
        %2199 = vmatprep.mubr.f32.mxu0 0.0
        %v2200 = vand.u32 %v1043, 4294901760
        %2201 = vmatmul.mubr.f32.gmra.mrb[0].mxu0 %v2200
        %v2202 = vpop.f32.mrb[0].mxu0
        %v2203 = vadd.f32 %v2034, %v2202
        %v2204 = vpop.f32.mrb[0].mxu0
        %2205 = vmatprep.mubr.f32.mxu0 0.0
        %v2206 = vand.u32 %v1046, 4294901760
        %2207 = vmatmul.mubr.f32.gmra.mrb[0].mxu0 %v2206
        %v2208 = vpop.f32.mrb[0].mxu0
        %v2209 = vadd.f32 %v2040, %v2208
        %v2210 = vpop.f32.mrb[0].mxu0
        %2211 = vmatprep.mubr.f32.mxu0 0.0
        %v2212 = vand.u32 %v1049, 4294901760
        %2213 = vmatmul.mubr.f32.gmra.mrb[0].mxu0 %v2212
        %v2214 = vpop.f32.mrb[0].mxu0
        %v2215 = vadd.f32 %v2046, %v2214
        %v2216 = vpop.f32.mrb[0].mxu0
        %2217 = vmatprep.mubr.f32.mxu0 0.0
        %v2218 = vand.u32 %v1052, 4294901760
        %2219 = vmatmul.mubr.f32.gmra.mrb[0].mxu0 %v2218
        %v2220 = vpop.f32.mrb[0].mxu0
        %v2221 = vadd.f32 %v2052, %v2220
        %v2222 = vpop.f32.mrb[0].mxu0
        %2223 = vmatprep.mubr.f32.mxu0 0.0
        %v2224 = vand.u32 %v1055, 4294901760
        %2225 = vmatmul.mubr.f32.gmra.mrb[0].mxu0 %v2224
        %v2226 = vpop.f32.mrb[0].mxu0
        %v2227 = vadd.f32 %v2058, %v2226
        %v2228 = vpop.f32.mrb[0].mxu0
        %2229 = vmatprep.mubr.f32.mxu0 0.0
        %v2230 = vand.u32 %v1058, 4294901760
        %2231 = vmatmul.mubr.f32.gmra.mrb[0].mxu0 %v2230
        %v2232 = vpop.f32.mrb[0].mxu0
        %v2233 = vadd.f32 %v2064, %v2232
        %v2234 = vpop.f32.mrb[0].mxu0
        %2235 = vmatprep.mubr.f32.mxu0 0.0
        %v2236 = vand.u32 %v1061, 4294901760
        %2237 = vmatmul.mubr.f32.gmra.mrb[0].mxu0 %v2236
        %v2238 = vpop.f32.mrb[0].mxu0
        %v2239 = vadd.f32 %v2070, %v2238
        %v2240 = vpop.f32.mrb[0].mxu0
        %2241 = vmatprep.mubr.f32.mxu0 0.0
        %v2242 = vand.u32 %v1064, 4294901760
        %2243 = vmatmul.mubr.f32.gmra.mrb[0].mxu0 %v2242
        %v2244 = vpop.f32.mrb[0].mxu0
        %v2245 = vadd.f32 %v2076, %v2244
        %v2246 = vpop.f32.mrb[0].mxu0
        %2247 = vdwg.mxu0
        %v2248 = vsel %vm1017, %v2155, -inf
        %v2249 = vsel %vm1017, %v2161, -inf
        %v2250 = vmax.f32 %v2248, %v2249
        %v2251 = vrot.slane %v2250, 4
        %v2252 = vmax.f32 %v2250, %v2251
        %v2253 = vrot.slane %v2252, 2
        %v2254 = vmax.f32 %v2252, %v2253
        %v2255 = vrot.slane %v2254, 1
        %v2256 = vmax.f32 %v2254, %v2255
        %v2257 = vsel %vm1017, %v2167, -inf
        %v2258 = vsel %vm1017, %v2173, -inf
        %v2259 = vmax.f32 %v2257, %v2258
        %v2260 = vrot.slane %v2259, 4
        %v2261 = vmax.f32 %v2259, %v2260
        %v2262 = vrot.slane %v2261, 2
        %v2263 = vmax.f32 %v2261, %v2262
        %v2264 = vrot.slane %v2263, 1
        %v2265 = vmax.f32 %v2263, %v2264
        %v2266 = vsel %vm1017, %v2179, -inf
        %v2267 = vsel %vm1017, %v2185, -inf
        %v2268 = vmax.f32 %v2266, %v2267
        %v2269 = vrot.slane %v2268, 4
        %v2270 = vmax.f32 %v2268, %v2269
        %v2271 = vrot.slane %v2270, 2
        %v2272 = vmax.f32 %v2270, %v2271
        %v2273 = vrot.slane %v2272, 1
        %v2274 = vmax.f32 %v2272, %v2273
        %v2275 = vsel %vm1017, %v2191, -inf
        %v2276 = vsel %vm1017, %v2197, -inf
        %v2277 = vmax.f32 %v2275, %v2276
        %v2278 = vrot.slane %v2277, 4
        %v2279 = vmax.f32 %v2277, %v2278
        %v2280 = vrot.slane %v2279, 2
        %v2281 = vmax.f32 %v2279, %v2280
        %v2282 = vrot.slane %v2281, 1
        %v2283 = vmax.f32 %v2281, %v2282
        %v2284 = vsel %vm1017, %v2203, -inf
        %v2285 = vsel %vm1017, %v2209, -inf
        %v2286 = vmax.f32 %v2284, %v2285
        %v2287 = vrot.slane %v2286, 4
        %v2288 = vmax.f32 %v2286, %v2287
        %v2289 = vrot.slane %v2288, 2
        %v2290 = vmax.f32 %v2288, %v2289
        %v2291 = vrot.slane %v2290, 1
        %v2292 = vmax.f32 %v2290, %v2291
        %v2293 = vsel %vm1017, %v2215, -inf
        %v2294 = vsel %vm1017, %v2221, -inf
        %v2295 = vmax.f32 %v2293, %v2294
        %v2296 = vrot.slane %v2295, 4
        %v2297 = vmax.f32 %v2295, %v2296
        %v2298 = vrot.slane %v2297, 2
        %v2299 = vmax.f32 %v2297, %v2298
        %v2300 = vrot.slane %v2299, 1
        %v2301 = vmax.f32 %v2299, %v2300
        %v2302 = vsel %vm1017, %v2227, -inf
        %v2303 = vsel %vm1017, %v2233, -inf
        %v2304 = vmax.f32 %v2302, %v2303
        %v2305 = vrot.slane %v2304, 4
        %v2306 = vmax.f32 %v2304, %v2305
        %v2307 = vrot.slane %v2306, 2
        %v2308 = vmax.f32 %v2306, %v2307
        %v2309 = vrot.slane %v2308, 1
        %v2310 = vmax.f32 %v2308, %v2309
        %v2311 = vsel %vm1017, %v2239, -inf
        %v2312 = vsel %vm1017, %v2245, -inf
        %v2313 = vmax.f32 %v2311, %v2312
        %v2314 = vrot.slane %v2313, 4
        %v2315 = vmax.f32 %v2313, %v2314
        %v2316 = vrot.slane %v2315, 2
        %v2317 = vmax.f32 %v2315, %v2316
        %v2318 = vrot.slane %v2317, 1
        %v2319 = vmax.f32 %v2317, %v2318
        %v2320 = vld [vmem:[%s5] sm:$0x1]
        %v2322 = vlaneseq
        %v2323 = vshrl.u32 %v2322, 7
        %v2324 = vsub.s32 0, %v2323
        %v2325 = vrot.slane %v2320, %v2324
        %v2327 = vadd.f32 %v2256, %v2325
        %v2328 = vadd.f32 %v2265, %v2325
        %v2329 = vadd.f32 %v2274, %v2325
        %v2330 = vadd.f32 %v2283, %v2325
        %v2331 = vadd.f32 %v2292, %v2325
        %v2332 = vadd.f32 %v2301, %v2325
        %v2333 = vadd.f32 %v2310, %v2325
        %v2334 = vadd.f32 %v2319, %v2325
        %v2335 = vmax.f32 %v2327, 0.0
        %v2336 = vmax.f32 %v2328, 0.0
        %v2337 = vmax.f32 %v2329, 0.0
        %v2338 = vmax.f32 %v2330, 0.0
        %v2339 = vmax.f32 %v2331, 0.0
        %v2340 = vmax.f32 %v2332, 0.0
        %v2341 = vmax.f32 %v2333, 0.0
        %v2342 = vmax.f32 %v2334, 0.0
        %v2351 = vrot.slane %v2336, 7
        %vm2352 = vcmask 1041409
        %v2353 = vsel %vm2352, %v2351, %v2335
        %v2354 = vrot.slane %v2337, 6
        %vm2355 = vcmask 1042434
        %v2356 = vsel %vm2355, %v2354, %v2353
        %v2357 = vrot.slane %v2338, 5
        %vm2358 = vcmask 1043459
        %v2359 = vsel %vm2358, %v2357, %v2356
        %v2360 = vrot.slane %v2339, 4
        %vm2361 = vcmask 1044484
        %v2362 = vsel %vm2361, %v2360, %v2359
        %v2363 = vrot.slane %v2340, 3
        %vm2364 = vcmask 1045509
        %v2365 = vsel %vm2364, %v2363, %v2362
        %v2366 = vrot.slane %v2341, 2
        %vm2367 = vcmask 1046534
        %v2368 = vsel %vm2367, %v2366, %v2365
        %v2369 = vrot.slane %v2342, 1
        %vm2370 = vcmask 1047559
        %v2371 = vsel %vm2370, %v2369, %v2368
        %2373 = vst.msk [vmem:[%s242] sm:$0xff] %vm1017, %v2371
        %s2374 = sand.u32 %s159, 1
        %s2375 = scalar_lea.sflag [#allocation3], %s2374
        %s2376 = sand.u32 %s159, 1
        %s2377 = smul.addr %s2376, 8
        %s2378 = scalar_lea.vmem [#allocation2], %s2377
        // Predicated region
        $region45: #{tpu_custom_call.1} parent=43 // pred_check
          %p2379 = pneg %p169
        $region46: #{tpu_custom_call.1} parent=43 // pred_check_branch
          %2381 = sbr.rel (%p2379) target = $region48
        $region47: #{tpu_custom_call.1} parent=43 // pred_region
          %s2383 = ssub.s32 128, 128
          %2384 = vsyncadd %s2375, %s2383
          %s2385 = smul.addr %s20, 128
          %s2386 = scalar_lea.hbm %s6, %s2385
          %s2388 = sshll.u32 %s2378, 4
          %s2389 = int_to_ptr.vmem [resolvable:$true] %s2388
          %2391 = dma.vmem_to_hbm [thread:$0]  %s2389, 128, %s2386, %s2375
        $region48: #{tpu_custom_call.1} parent=43 // pred_fallthru
          _
      $region44: #{tpu_custom_call.1} parent=5 // pred_fallthru
        _
      %p2392 = scmp.le.s32.totalorder 2, %s15
      // Predicated region
      $region49: #{tpu_custom_call.1} parent=5 // pred_check
        %p2393 = pneg %p2392
      $region50: #{tpu_custom_call.1} parent=5 // pred_check_branch
        %2395 = sbr.rel (%p2393) target = $region52
      $region51: #{tpu_custom_call.1} parent=5 // pred_region
        %s2396 = ssub.s32 %s15, 2
        // Predicated region
        $region53: #{tpu_custom_call.1} parent=51 // pred_check
          %p2397 = pneg %p175
        $region54: #{tpu_custom_call.1} parent=51 // pred_check_branch
          %2399 = sbr.rel (%p2397) target = $region56
        $region55: #{tpu_custom_call.1} parent=51 // pred_region
          %s2400 = sand.u32 %s160, 1
          %s2401 = scalar_lea.sflag [#allocation3], %s2400
          %s2402 = sand.u32 %s160, 1
          %s2403 = smul.addr %s2402, 8
          %s2404 = scalar_lea.vmem [#allocation2], %s2403
          %2405 = dma.done %s2401, 128
        $region56: #{tpu_custom_call.1} parent=51 // pred_fallthru
          _
      $region52: #{tpu_custom_call.1} parent=5 // pred_fallthru
        _
    $region6: #{tpu_custom_call.1} parent=1 // loop_footer
      %s19 = sadd.s32 1, %s15
    $region7: #{tpu_custom_call.1} parent=1 // loop_footer_branch
      %14 = sbr.rel target = $region3
    $region8: #{tpu_custom_call.1} parent=1 // loop_exit
      _
    %2406 = vsyncpa [#allocation3], 1
    %s2407 = scalar_lea.sflag [#allocation3], 1
    %2408 = vsyncpa %s2407, 1

</llo_original>
